<compile_context>
chip_gen: v7x
topology: tpu7x:2x2x1
jax: 0.10.0
libtpu: 0.0.40
codegen_flags: <defaults>
</compile_context>

<pallas_src>
import functools

import jax
import jax.numpy as jnp
from jax import lax
from jax.experimental import pallas as pl
from jax.experimental.pallas import tpu as pltpu


# ----------------------------------------------------------------------------
# Fused Pallas kernel (one batch element per grid step)
# ----------------------------------------------------------------------------
def _fused_basic_block_cbam_kernel(
        x_ref,       # (1, C, HW) f32   input image, channels on sublanes, HW on lanes
        w1_ref,      # (C, 9C)    bf16  conv1 im2col weights, BN1 scale folded in
        b1_ref,      # (C, 1)     f32   BN1 bias
        w2_ref,      # (C, 9C)    bf16  conv2 im2col weights, BN2 scale folded in
        b2_ref,      # (C, 1)     f32   BN2 bias
        caw1t_ref,   # (hid, C)   f32   CBAM channel-MLP fc1, transposed
        caw2t_ref,   # (C, hid)   f32   CBAM channel-MLP fc2, transposed
        saw_ref,     # (7, 14)    f32   7x7 spatial taps: col = 2*kw + {0: mean, 1: max}
        sab_ref,     # (1, 1)     f32   spatial conv bias
        o_ref,       # (1, C, HW) f32   output image
        *, H, W):
    HW = H * W
    x = x_ref[0]                                   # (C, HW) f32
    C = x.shape[0]

    # Column-validity masks (shared by the 3x3 convs and the 7x7 spatial conv).
    # Built once and reused -- no per-tap recomputation / broadcasts in the loops.
    w_pos = lax.broadcasted_iota(jnp.int32, (1, HW), 1) % W
    colmask = {d: ((w_pos + d >= 0) & (w_pos + d < W)).astype(jnp.float32)
               for d in range(-3, 4) if d != 0}

    # ---- 3x3 conv + folded BN (im2col -> one MXU matmul, bf16 operands) ----
    def conv3x3_bn(inp, w_ref, b_ref):
        # Zero halo is built in VMEM: pad the flat (C, HW) slab by W+1 on each side so
        # every tap offset dh*W+dw becomes a static lane slice; only the column
        # wrap-around needs masking (row overflow lands in the zero pad).
        zpad = jnp.zeros((C, W + 1), jnp.float32)
        buf = jnp.concatenate([zpad, inp, zpad], axis=1)       # (C, HW + 2W + 2)
        taps = []
        for dh in (-1, 0, 1):
            for dw in (-1, 0, 1):
                off = (W + 1) + dh * W + dw
                sh = buf[:, off:off + HW]                      # (C, HW)
                if dw != 0:
                    sh = sh * colmask[dw]
                taps.append(sh)
        xcol = jnp.concatenate(taps, axis=0).astype(jnp.bfloat16)   # (9C, HW)
        acc = jnp.dot(w_ref[...], xcol,
                      preferred_element_type=jnp.float32)      # (C, HW) f32
        return acc + b_ref[...]

    h1 = jnp.maximum(conv3x3_bn(x, w1_ref, b1_ref), 0.0)            # conv1+bn1+relu
    h = jnp.maximum(conv3x3_bn(h1, w2_ref, b2_ref) + x, 0.0)        # conv2+bn2+skip+relu

    # ---- CBAM channel attention (f32) ----
    avg = jnp.mean(h, axis=1, keepdims=True)                   # (C, 1)
    mx = jnp.max(h, axis=1, keepdims=True)                     # (C, 1)
    v = jnp.concatenate([avg, mx], axis=1)                     # (C, 2)
    hid = jnp.maximum(
        jnp.dot(caw1t_ref[...], v, preferred_element_type=jnp.float32), 0.0)
    lo = jnp.dot(caw2t_ref[...], hid, preferred_element_type=jnp.float32)  # (C, 2)
    ca = jax.nn.sigmoid(lo[:, 0:1] + lo[:, 1:2])               # (C, 1)
    y = h * ca                                                 # (C, HW)

    # ---- CBAM spatial attention ----
    # channel mean / max maps computed in-kernel (no HBM round-trip, no lane-2 store)
    s_mean = jnp.mean(y, axis=0, keepdims=True)                # (1, HW)
    s_max = jnp.max(y, axis=0, keepdims=True)                  # (1, HW)
    smaps = jnp.concatenate([s_mean, s_max], axis=0)           # (2, HW)

    # 7x7 conv, stage 1: 7 column shifts of the stacked maps -> one (7,14) matmul.
    zp3 = jnp.zeros((2, 3), jnp.float32)
    sbuf = jnp.concatenate([zp3, smaps, zp3], axis=1)          # (2, HW + 6)
    rows = []
    for dw in range(-3, 4):
        sh = sbuf[:, 3 + dw:3 + dw + HW]                       # (2, HW)
        if dw != 0:
            sh = sh * colmask[dw]
        rows.append(sh)
    scol = jnp.concatenate(rows, axis=0)                       # (14, HW)
    u = jnp.dot(saw_ref[...], scol,
                preferred_element_type=jnp.float32)            # (7, HW)

    # Stage 2: 7 row shifts (whole-row offsets land in the zero pad -> no extra mask).
    zrow = jnp.zeros((7, 3 * W), jnp.float32)
    ubuf = jnp.concatenate([zrow, u, zrow], axis=1)            # (7, HW + 6W)
    acc = jnp.zeros((1, HW), jnp.float32)
    for r in range(7):
        acc = acc + ubuf[r:r + 1, r * W:r * W + HW]
    sa = jax.nn.sigmoid(acc + sab_ref[...])                    # (1, HW)

    o_ref[0] = y * sa


# ----------------------------------------------------------------------------
# Wrapper: NCHW in / NCHW out, free reshape to the lane-dense (N, C, H*W) layout
# ----------------------------------------------------------------------------
def basic_block_cbam_forward(x_nchw, P):
    N, C, H, W = x_nchw.shape
    HW = H * W
    hidden = P["ca_w1t"].shape[0]
    x_flat = x_nchw.reshape(N, C, HW)   # contiguous merge of trailing dims: no copy

    kern = functools.partial(_fused_basic_block_cbam_kernel, H=H, W=W)
    out_flat = pl.pallas_call(
        kern,
        out_shape=jax.ShapeDtypeStruct((N, C, HW), jnp.float32),
        grid=(N,),
        in_specs=[
            pl.BlockSpec((1, C, HW), lambda n: (n, 0, 0)),      # x (lane-dense)
            pl.BlockSpec((C, 9 * C), lambda n: (0, 0)),         # conv1 weights (bf16)
            pl.BlockSpec((C, 1), lambda n: (0, 0)),             # bn1 bias
            pl.BlockSpec((C, 9 * C), lambda n: (0, 0)),         # conv2 weights (bf16)
            pl.BlockSpec((C, 1), lambda n: (0, 0)),             # bn2 bias
            pl.BlockSpec((hidden, C), lambda n: (0, 0)),        # CBAM MLP fc1^T
            pl.BlockSpec((C, hidden), lambda n: (0, 0)),        # CBAM MLP fc2^T
            pl.BlockSpec((7, 14), lambda n: (0, 0)),            # 7x7 spatial taps
            pl.BlockSpec((1, 1), lambda n: (0, 0)),             # spatial bias
        ],
        out_specs=pl.BlockSpec((1, C, HW), lambda n: (n, 0, 0)),
        compiler_params=pltpu.CompilerParams(
            dimension_semantics=("parallel",)),
    )(x_flat, P["w1_mat"], P["b1_col"], P["w2_mat"], P["b2_col"],
      P["ca_w1t"], P["ca_w2t"], P["sa_w_mat"], P["sa_b_11"])
    return out_flat.reshape(N, C, H, W)


# ----------------------------------------------------------------------------
# Pure-JAX reference (f32, HIGHEST precision) for the numerical sanity check
# ----------------------------------------------------------------------------
def ref_forward(x, P):
    relu = jax.nn.relu

    def conv2d(a, w, pad):
        return lax.conv_general_dilated(
            a, w, window_strides=(1, 1), padding=[(pad, pad), (pad, pad)],
            dimension_numbers=("NCHW", "OIHW", "NCHW"),
            precision=lax.Precision.HIGHEST)

    def bn(a, s, b):
        return a * s[None, :, None, None] + b[None, :, None, None]

    identity = x
    out = relu(bn(conv2d(x, P["w1_oihw"], 1), P["s1"], P["b1"]))
    out = bn(conv2d(out, P["w2_oihw"], 1), P["s2"], P["b2"])
    out = relu(out + identity)
    # channel attention
    avg = out.mean(axis=(2, 3))
    mx = out.max(axis=(2, 3))
    mlp = lambda v: relu(v @ P["ca_w1"]) @ P["ca_w2"]
    ca = jax.nn.sigmoid(mlp(avg) + mlp(mx))
    y = out * ca[:, :, None, None]
    # spatial attention
    s_mean = y.mean(axis=1, keepdims=True)
    s_max = y.max(axis=1, keepdims=True)
    s = jnp.concatenate([s_mean, s_max], axis=1)
    sa = jax.nn.sigmoid(conv2d(s, P["sa_w_oihw"], 3) + P["sa_b"])
    return y * sa


# ----------------------------------------------------------------------------
# Deterministic parameter construction + main
# ----------------------------------------------------------------------------
def make_params(key, C):
    ks = jax.random.split(key, 16)
    eps = 1e-5
    hidden = max(1, C // 2)  # CBAM reduction ratio 2 (clamped >= 1)

    w1_oihw = 0.1 * jax.random.normal(ks[0], (C, C, 3, 3), jnp.float32)
    w2_oihw = 0.1 * jax.random.normal(ks[1], (C, C, 3, 3), jnp.float32)

    def fold_bn(kg, kb, km, kv):
        gamma = 1.0 + 0.1 * jax.random.normal(kg, (C,), jnp.float32)
        beta = 0.1 * jax.random.normal(kb, (C,), jnp.float32)
        mean = 0.1 * jax.random.normal(km, (C,), jnp.float32)
        var = jax.random.uniform(kv, (C,), jnp.float32, 0.5, 1.5)
        scale = gamma / jnp.sqrt(var + eps)
        bias = beta - mean * scale
        return scale, bias

    s1, b1 = fold_bn(ks[2], ks[3], ks[4], ks[5])
    s2, b2 = fold_bn(ks[6], ks[7], ks[8], ks[9])

    ca_w1 = 0.3 * jax.random.normal(ks[10], (C, hidden), jnp.float32)
    ca_w2 = 0.3 * jax.random.normal(ks[11], (hidden, C), jnp.float32)
    sa_w_oihw = 0.1 * jax.random.normal(ks[12], (1, 2, 7, 7), jnp.float32)
    sa_b = 0.05 * jax.random.normal(ks[13], (), jnp.float32)

    # ---- kernel-layout params ----
    def im2col_w(w_oihw, scale):
        # fold BN scale into the conv weights; row co, col (kh*3+kw)*C + ci
        wf = w_oihw * scale[:, None, None, None]
        return jnp.transpose(wf, (0, 2, 3, 1)).reshape(C, 9 * C).astype(jnp.bfloat16)

    w1_mat = im2col_w(w1_oihw, s1)
    w2_mat = im2col_w(w2_oihw, s2)
    b1_col = b1.reshape(C, 1)
    b2_col = b2.reshape(C, 1)
    ca_w1t = ca_w1.T                                   # (hidden, C)
    ca_w2t = ca_w2.T                                   # (C, hidden)
    # (7, 14): column 2*kw+0 = mean-map tap, 2*kw+1 = max-map tap
    sa_w_mat = jnp.stack([sa_w_oihw[0, 0], sa_w_oihw[0, 1]], axis=-1).reshape(7, 14)
    sa_b_11 = sa_b.reshape(1, 1)

    return dict(
        w1_oihw=w1_oihw, w2_oihw=w2_oihw, s1=s1, b1=b1, s2=s2, b2=b2,
        ca_w1=ca_w1, ca_w2=ca_w2, sa_w_oihw=sa_w_oihw, sa_b=sa_b,
        w1_mat=w1_mat, w2_mat=w2_mat, b1_col=b1_col, b2_col=b2_col,
        ca_w1t=ca_w1t, ca_w2t=ca_w2t, sa_w_mat=sa_w_mat, sa_b_11=sa_b_11,
    )


if __name__ == "__main__":
    N, C, H, W = 2, 4, 16, 16
    key = jax.random.PRNGKey(0)
    k_x, k_p = jax.random.split(key)
    x = jax.random.normal(k_x, (N, C, H, W), jnp.float32)   # NCHW, like PyTorch
    params = make_params(k_p, C)

    fwd = jax.jit(basic_block_cbam_forward)
    out = jax.block_until_ready(fwd(x, params))

    ref = ref_forward(x, params)
    err = float(jnp.max(jnp.abs(out - ref)))
    assert out.shape == (N, C, H, W), out.shape
    # Tolerance accounts for bf16 MXU operands in the two convs vs. the f32 /
    # Precision.HIGHEST reference (per the perf review's v6e/v7x recommendation).
    assert err < 5e-2, f"max abs error too large: {err}"
    print("KERNEL_OK")
</pallas_src>

<mosaic_0001>
module attributes {stable_mosaic.version = 11 : i64} {
  func.func @_fused_basic_block_cbam_kernel(%arg0: i32, %arg1: memref<1x4x256xf32, #tpu.memory_space<vmem>>, %arg2: memref<4x36xbf16, #tpu.memory_space<vmem>>, %arg3: memref<4x1xf32, #tpu.memory_space<vmem>>, %arg4: memref<4x36xbf16, #tpu.memory_space<vmem>>, %arg5: memref<4x1xf32, #tpu.memory_space<vmem>>, %arg6: memref<2x4xf32, #tpu.memory_space<vmem>>, %arg7: memref<4x2xf32, #tpu.memory_space<vmem>>, %arg8: memref<7x14xf32, #tpu.memory_space<vmem>>, %arg9: memref<1x1xf32, #tpu.memory_space<vmem>>, %arg10: memref<1x4x256xf32, #tpu.memory_space<vmem>>) attributes {dimension_semantics = [#tpu.dimension_semantics<parallel>], iteration_bounds = array<i64: 2>, scalar_prefetch = 0 : i64, scratch_operands = 0 : i64, tpu.core_type = #tpu.core_type<tc>, window_params = [{transform_indices = @transform_0, window_bounds = array<i64: 1, 4, 256>}, {pipeline_mode = #tpu.pipeline_mode<synchronous>, transform_indices = @transform_1, window_bounds = array<i64: 4, 36>}, {pipeline_mode = #tpu.pipeline_mode<synchronous>, transform_indices = @transform_2, window_bounds = array<i64: 4, 1>}, {pipeline_mode = #tpu.pipeline_mode<synchronous>, transform_indices = @transform_3, window_bounds = array<i64: 4, 36>}, {pipeline_mode = #tpu.pipeline_mode<synchronous>, transform_indices = @transform_4, window_bounds = array<i64: 4, 1>}, {pipeline_mode = #tpu.pipeline_mode<synchronous>, transform_indices = @transform_5, window_bounds = array<i64: 2, 4>}, {pipeline_mode = #tpu.pipeline_mode<synchronous>, transform_indices = @transform_6, window_bounds = array<i64: 4, 2>}, {pipeline_mode = #tpu.pipeline_mode<synchronous>, transform_indices = @transform_7, window_bounds = array<i64: 7, 14>}, {pipeline_mode = #tpu.pipeline_mode<synchronous>, transform_indices = @transform_8, window_bounds = array<i64: 1, 1>}, {transform_indices = @transform_9, window_bounds = array<i64: 1, 4, 256>}]} {
    %c0 = arith.constant 0 : index
    %c0_0 = arith.constant 0 : index
    %c0_1 = arith.constant 0 : index
    %0 = vector.load %arg1[%c0, %c0_0, %c0_1] : memref<1x4x256xf32, #tpu.memory_space<vmem>>, vector<1x4x256xf32>
    %1 = vector.shape_cast %0 : vector<1x4x256xf32> to vector<4x256xf32>
    %2 = tpu.iota {dimensions = array<i32: 1>} : vector<1x256xi32>
    %c16_i32 = arith.constant 16 : i32
    %c0_i32 = arith.constant 0 : i32
    %3 = arith.cmpi eq, %c16_i32, %c0_i32 : i32
    %c1_i32 = arith.constant 1 : i32
    %4 = arith.select %3, %c1_i32, %c16_i32 : i32
    %5 = vector.broadcast %4 : i32 to vector<1x256xi32>
    %6 = arith.remsi %2, %5 : vector<1x256xi32>
    %c0_i32_2 = arith.constant 0 : i32
    %7 = vector.broadcast %c0_i32_2 : i32 to vector<1x256xi32>
    %8 = arith.cmpi ne, %6, %7 : vector<1x256xi32>
    %c0_i32_3 = arith.constant 0 : i32
    %9 = vector.broadcast %c0_i32_3 : i32 to vector<1x256xi32>
    %10 = arith.cmpi slt, %6, %9 : vector<1x256xi32>
    %c0_i32_4 = arith.constant 0 : i32
    %11 = arith.cmpi slt, %4, %c0_i32_4 : i32
    %12 = vector.broadcast %11 : i1 to vector<1x256xi1>
    %13 = vector.broadcast %12 : vector<1x256xi1> to vector<1x256xi1>
    %14 = arith.xori %10, %13 : vector<1x256xi1>
    %15 = arith.andi %14, %8 : vector<1x256xi1>
    %16 = vector.broadcast %4 : i32 to vector<1x256xi32>
    %17 = arith.addi %6, %16 : vector<1x256xi32>
    %18 = arith.select %15, %17, %6 : vector<1x256xi1>, vector<1x256xi32>
    %c-3_i32 = arith.constant -3 : i32
    %19 = vector.broadcast %c-3_i32 : i32 to vector<1x256xi32>
    %20 = arith.addi %18, %19 : vector<1x256xi32>
    %c0_i32_5 = arith.constant 0 : i32
    %21 = vector.broadcast %c0_i32_5 : i32 to vector<1x256xi32>
    %22 = arith.cmpi sge, %20, %21 : vector<1x256xi32>
    %c-3_i32_6 = arith.constant -3 : i32
    %23 = vector.broadcast %c-3_i32_6 : i32 to vector<1x256xi32>
    %24 = arith.addi %18, %23 : vector<1x256xi32>
    %c16_i32_7 = arith.constant 16 : i32
    %25 = vector.broadcast %c16_i32_7 : i32 to vector<1x256xi32>
    %26 = arith.cmpi slt, %24, %25 : vector<1x256xi32>
    %27 = arith.andi %22, %26 : vector<1x256xi1>
    %28 = arith.extui %27 : vector<1x256xi1> to vector<1x256xi32>
    %29 = arith.sitofp %28 : vector<1x256xi32> to vector<1x256xf32>
    %c-2_i32 = arith.constant -2 : i32
    %30 = vector.broadcast %c-2_i32 : i32 to vector<1x256xi32>
    %31 = arith.addi %18, %30 : vector<1x256xi32>
    %c0_i32_8 = arith.constant 0 : i32
    %32 = vector.broadcast %c0_i32_8 : i32 to vector<1x256xi32>
    %33 = arith.cmpi sge, %31, %32 : vector<1x256xi32>
    %c-2_i32_9 = arith.constant -2 : i32
    %34 = vector.broadcast %c-2_i32_9 : i32 to vector<1x256xi32>
    %35 = arith.addi %18, %34 : vector<1x256xi32>
    %c16_i32_10 = arith.constant 16 : i32
    %36 = vector.broadcast %c16_i32_10 : i32 to vector<1x256xi32>
    %37 = arith.cmpi slt, %35, %36 : vector<1x256xi32>
    %38 = arith.andi %33, %37 : vector<1x256xi1>
    %39 = arith.extui %38 : vector<1x256xi1> to vector<1x256xi32>
    %40 = arith.sitofp %39 : vector<1x256xi32> to vector<1x256xf32>
    %c-1_i32 = arith.constant -1 : i32
    %41 = vector.broadcast %c-1_i32 : i32 to vector<1x256xi32>
    %42 = arith.addi %18, %41 : vector<1x256xi32>
    %c0_i32_11 = arith.constant 0 : i32
    %43 = vector.broadcast %c0_i32_11 : i32 to vector<1x256xi32>
    %44 = arith.cmpi sge, %42, %43 : vector<1x256xi32>
    %c-1_i32_12 = arith.constant -1 : i32
    %45 = vector.broadcast %c-1_i32_12 : i32 to vector<1x256xi32>
    %46 = arith.addi %18, %45 : vector<1x256xi32>
    %c16_i32_13 = arith.constant 16 : i32
    %47 = vector.broadcast %c16_i32_13 : i32 to vector<1x256xi32>
    %48 = arith.cmpi slt, %46, %47 : vector<1x256xi32>
    %49 = arith.andi %44, %48 : vector<1x256xi1>
    %50 = arith.extui %49 : vector<1x256xi1> to vector<1x256xi32>
    %51 = arith.sitofp %50 : vector<1x256xi32> to vector<1x256xf32>
    %c1_i32_14 = arith.constant 1 : i32
    %52 = vector.broadcast %c1_i32_14 : i32 to vector<1x256xi32>
    %53 = arith.addi %18, %52 : vector<1x256xi32>
    %c0_i32_15 = arith.constant 0 : i32
    %54 = vector.broadcast %c0_i32_15 : i32 to vector<1x256xi32>
    %55 = arith.cmpi sge, %53, %54 : vector<1x256xi32>
    %c1_i32_16 = arith.constant 1 : i32
    %56 = vector.broadcast %c1_i32_16 : i32 to vector<1x256xi32>
    %57 = arith.addi %18, %56 : vector<1x256xi32>
    %c16_i32_17 = arith.constant 16 : i32
    %58 = vector.broadcast %c16_i32_17 : i32 to vector<1x256xi32>
    %59 = arith.cmpi slt, %57, %58 : vector<1x256xi32>
    %60 = arith.andi %55, %59 : vector<1x256xi1>
    %61 = arith.extui %60 : vector<1x256xi1> to vector<1x256xi32>
    %62 = arith.sitofp %61 : vector<1x256xi32> to vector<1x256xf32>
    %c2_i32 = arith.constant 2 : i32
    %63 = vector.broadcast %c2_i32 : i32 to vector<1x256xi32>
    %64 = arith.addi %18, %63 : vector<1x256xi32>
    %c0_i32_18 = arith.constant 0 : i32
    %65 = vector.broadcast %c0_i32_18 : i32 to vector<1x256xi32>
    %66 = arith.cmpi sge, %64, %65 : vector<1x256xi32>
    %c2_i32_19 = arith.constant 2 : i32
    %67 = vector.broadcast %c2_i32_19 : i32 to vector<1x256xi32>
    %68 = arith.addi %18, %67 : vector<1x256xi32>
    %c16_i32_20 = arith.constant 16 : i32
    %69 = vector.broadcast %c16_i32_20 : i32 to vector<1x256xi32>
    %70 = arith.cmpi slt, %68, %69 : vector<1x256xi32>
    %71 = arith.andi %66, %70 : vector<1x256xi1>
    %72 = arith.extui %71 : vector<1x256xi1> to vector<1x256xi32>
    %73 = arith.sitofp %72 : vector<1x256xi32> to vector<1x256xf32>
    %c3_i32 = arith.constant 3 : i32
    %74 = vector.broadcast %c3_i32 : i32 to vector<1x256xi32>
    %75 = arith.addi %18, %74 : vector<1x256xi32>
    %c0_i32_21 = arith.constant 0 : i32
    %76 = vector.broadcast %c0_i32_21 : i32 to vector<1x256xi32>
    %77 = arith.cmpi sge, %75, %76 : vector<1x256xi32>
    %c3_i32_22 = arith.constant 3 : i32
    %78 = vector.broadcast %c3_i32_22 : i32 to vector<1x256xi32>
    %79 = arith.addi %18, %78 : vector<1x256xi32>
    %c16_i32_23 = arith.constant 16 : i32
    %80 = vector.broadcast %c16_i32_23 : i32 to vector<1x256xi32>
    %81 = arith.cmpi slt, %79, %80 : vector<1x256xi32>
    %82 = arith.andi %77, %81 : vector<1x256xi1>
    %83 = arith.extui %82 : vector<1x256xi1> to vector<1x256xi32>
    %84 = arith.sitofp %83 : vector<1x256xi32> to vector<1x256xf32>
    %cst = arith.constant 0.000000e+00 : f32
    %85 = vector.broadcast %cst : f32 to vector<4x17xf32>
    %86 = tpu.concatenate %85, %1, %85 in 1 : vector<4x17xf32>, vector<4x256xf32>, vector<4x17xf32> -> vector<4x290xf32>
    %87 = vector.extract_strided_slice %86 {offsets = [0, 0], sizes = [4, 256], strides = [1, 1]} : vector<4x290xf32> to vector<4x256xf32>
    %88 = vector.broadcast %51 : vector<1x256xf32> to vector<4x256xf32>
    %89 = arith.mulf %87, %88 : vector<4x256xf32>
    %90 = vector.extract_strided_slice %86 {offsets = [0, 1], sizes = [4, 256], strides = [1, 1]} : vector<4x290xf32> to vector<4x256xf32>
    %91 = vector.extract_strided_slice %86 {offsets = [0, 2], sizes = [4, 256], strides = [1, 1]} : vector<4x290xf32> to vector<4x256xf32>
    %92 = vector.broadcast %62 : vector<1x256xf32> to vector<4x256xf32>
    %93 = arith.mulf %91, %92 : vector<4x256xf32>
    %94 = vector.extract_strided_slice %86 {offsets = [0, 16], sizes = [4, 256], strides = [1, 1]} : vector<4x290xf32> to vector<4x256xf32>
    %95 = vector.broadcast %51 : vector<1x256xf32> to vector<4x256xf32>
    %96 = arith.mulf %94, %95 : vector<4x256xf32>
    %97 = vector.extract_strided_slice %86 {offsets = [0, 17], sizes = [4, 256], strides = [1, 1]} : vector<4x290xf32> to vector<4x256xf32>
    %98 = vector.extract_strided_slice %86 {offsets = [0, 18], sizes = [4, 256], strides = [1, 1]} : vector<4x290xf32> to vector<4x256xf32>
    %99 = vector.broadcast %62 : vector<1x256xf32> to vector<4x256xf32>
    %100 = arith.mulf %98, %99 : vector<4x256xf32>
    %101 = vector.extract_strided_slice %86 {offsets = [0, 32], sizes = [4, 256], strides = [1, 1]} : vector<4x290xf32> to vector<4x256xf32>
    %102 = vector.broadcast %51 : vector<1x256xf32> to vector<4x256xf32>
    %103 = arith.mulf %101, %102 : vector<4x256xf32>
    %104 = vector.extract_strided_slice %86 {offsets = [0, 33], sizes = [4, 256], strides = [1, 1]} : vector<4x290xf32> to vector<4x256xf32>
    %105 = vector.extract_strided_slice %86 {offsets = [0, 34], sizes = [4, 256], strides = [1, 1]} : vector<4x290xf32> to vector<4x256xf32>
    %106 = vector.broadcast %62 : vector<1x256xf32> to vector<4x256xf32>
    %107 = arith.mulf %105, %106 : vector<4x256xf32>
    %108 = tpu.concatenate %89, %90, %93, %96, %97, %100, %103, %104, %107 in 0 : vector<4x256xf32>, vector<4x256xf32>, vector<4x256xf32>, vector<4x256xf32>, vector<4x256xf32>, vector<4x256xf32>, vector<4x256xf32>, vector<4x256xf32>, vector<4x256xf32> -> vector<36x256xf32>
    %109 = arith.truncf %108 : vector<36x256xf32> to vector<36x256xbf16>
    %c0_24 = arith.constant 0 : index
    %c0_25 = arith.constant 0 : index
    %110 = vector.load %arg2[%c0_24, %c0_25] : memref<4x36xbf16, #tpu.memory_space<vmem>>, vector<4x36xbf16>
    %cst_26 = arith.constant dense<0.000000e+00> : vector<4x256xf32>
    %111 = tpu.matmul %110, %109, %cst_26 {dimension_numbers = #tpu.dot_dimension_numbers<[1], [0], [0], [1], [0, 0, 1, 1], [], []>} : vector<4x36xbf16>, vector<36x256xbf16>, vector<4x256xf32> -> vector<4x256xf32>
    %c0_27 = arith.constant 0 : index
    %c0_28 = arith.constant 0 : index
    %112 = vector.load %arg3[%c0_27, %c0_28] : memref<4x1xf32, #tpu.memory_space<vmem>>, vector<4x1xf32>
    %113 = vector.broadcast %112 : vector<4x1xf32> to vector<4x256xf32>
    %114 = arith.addf %111, %113 : vector<4x256xf32>
    %cst_29 = arith.constant 0.000000e+00 : f32
    %115 = vector.broadcast %cst_29 : f32 to vector<4x256xf32>
    %116 = arith.maximumf %114, %115 : vector<4x256xf32>
    %cst_30 = arith.constant 0.000000e+00 : f32
    %117 = vector.broadcast %cst_30 : f32 to vector<4x17xf32>
    %118 = tpu.concatenate %117, %116, %117 in 1 : vector<4x17xf32>, vector<4x256xf32>, vector<4x17xf32> -> vector<4x290xf32>
    %119 = vector.extract_strided_slice %118 {offsets = [0, 0], sizes = [4, 256], strides = [1, 1]} : vector<4x290xf32> to vector<4x256xf32>
    %120 = vector.broadcast %51 : vector<1x256xf32> to vector<4x256xf32>
    %121 = arith.mulf %119, %120 : vector<4x256xf32>
    %122 = vector.extract_strided_slice %118 {offsets = [0, 1], sizes = [4, 256], strides = [1, 1]} : vector<4x290xf32> to vector<4x256xf32>
    %123 = vector.extract_strided_slice %118 {offsets = [0, 2], sizes = [4, 256], strides = [1, 1]} : vector<4x290xf32> to vector<4x256xf32>
    %124 = vector.broadcast %62 : vector<1x256xf32> to vector<4x256xf32>
    %125 = arith.mulf %123, %124 : vector<4x256xf32>
    %126 = vector.extract_strided_slice %118 {offsets = [0, 16], sizes = [4, 256], strides = [1, 1]} : vector<4x290xf32> to vector<4x256xf32>
    %127 = vector.broadcast %51 : vector<1x256xf32> to vector<4x256xf32>
    %128 = arith.mulf %126, %127 : vector<4x256xf32>
    %129 = vector.extract_strided_slice %118 {offsets = [0, 17], sizes = [4, 256], strides = [1, 1]} : vector<4x290xf32> to vector<4x256xf32>
    %130 = vector.extract_strided_slice %118 {offsets = [0, 18], sizes = [4, 256], strides = [1, 1]} : vector<4x290xf32> to vector<4x256xf32>
    %131 = vector.broadcast %62 : vector<1x256xf32> to vector<4x256xf32>
    %132 = arith.mulf %130, %131 : vector<4x256xf32>
    %133 = vector.extract_strided_slice %118 {offsets = [0, 32], sizes = [4, 256], strides = [1, 1]} : vector<4x290xf32> to vector<4x256xf32>
    %134 = vector.broadcast %51 : vector<1x256xf32> to vector<4x256xf32>
    %135 = arith.mulf %133, %134 : vector<4x256xf32>
    %136 = vector.extract_strided_slice %118 {offsets = [0, 33], sizes = [4, 256], strides = [1, 1]} : vector<4x290xf32> to vector<4x256xf32>
    %137 = vector.extract_strided_slice %118 {offsets = [0, 34], sizes = [4, 256], strides = [1, 1]} : vector<4x290xf32> to vector<4x256xf32>
    %138 = vector.broadcast %62 : vector<1x256xf32> to vector<4x256xf32>
    %139 = arith.mulf %137, %138 : vector<4x256xf32>
    %140 = tpu.concatenate %121, %122, %125, %128, %129, %132, %135, %136, %139 in 0 : vector<4x256xf32>, vector<4x256xf32>, vector<4x256xf32>, vector<4x256xf32>, vector<4x256xf32>, vector<4x256xf32>, vector<4x256xf32>, vector<4x256xf32>, vector<4x256xf32> -> vector<36x256xf32>
    %141 = arith.truncf %140 : vector<36x256xf32> to vector<36x256xbf16>
    %c0_31 = arith.constant 0 : index
    %c0_32 = arith.constant 0 : index
    %142 = vector.load %arg4[%c0_31, %c0_32] : memref<4x36xbf16, #tpu.memory_space<vmem>>, vector<4x36xbf16>
    %cst_33 = arith.constant dense<0.000000e+00> : vector<4x256xf32>
    %143 = tpu.matmul %142, %141, %cst_33 {dimension_numbers = #tpu.dot_dimension_numbers<[1], [0], [0], [1], [0, 0, 1, 1], [], []>} : vector<4x36xbf16>, vector<36x256xbf16>, vector<4x256xf32> -> vector<4x256xf32>
    %c0_34 = arith.constant 0 : index
    %c0_35 = arith.constant 0 : index
    %144 = vector.load %arg5[%c0_34, %c0_35] : memref<4x1xf32, #tpu.memory_space<vmem>>, vector<4x1xf32>
    %145 = vector.broadcast %144 : vector<4x1xf32> to vector<4x256xf32>
    %146 = arith.addf %143, %145 : vector<4x256xf32>
    %147 = arith.addf %146, %1 : vector<4x256xf32>
    %cst_36 = arith.constant 0.000000e+00 : f32
    %148 = vector.broadcast %cst_36 : f32 to vector<4x256xf32>
    %149 = arith.maximumf %147, %148 : vector<4x256xf32>
    %cst_37 = arith.constant dense<0.000000e+00> : vector<4xf32>
    %150 = vector.multi_reduction <add>, %149, %cst_37 [1] : vector<4x256xf32> to vector<4xf32>
    %151 = vector.shape_cast %150 : vector<4xf32> to vector<4x1xf32>
    %cst_38 = arith.constant 2.560000e+02 : f32
    %152 = vector.broadcast %cst_38 : f32 to vector<4x1xf32>
    %153 = arith.divf %151, %152 : vector<4x1xf32>
    %cst_39 = arith.constant dense<0xFF800000> : vector<4xf32>
    %154 = vector.multi_reduction <maximumf>, %149, %cst_39 [1] : vector<4x256xf32> to vector<4xf32>
    %155 = vector.shape_cast %154 : vector<4xf32> to vector<4x1xf32>
    %156 = tpu.concatenate %153, %155 in 1 : vector<4x1xf32>, vector<4x1xf32> -> vector<4x2xf32>
    %c0_40 = arith.constant 0 : index
    %c0_41 = arith.constant 0 : index
    %157 = vector.load %arg6[%c0_40, %c0_41] : memref<2x4xf32, #tpu.memory_space<vmem>>, vector<2x4xf32>
    %cst_42 = arith.constant dense<0.000000e+00> : vector<2x2xf32>
    %158 = tpu.matmul %157, %156, %cst_42 {dimension_numbers = #tpu.dot_dimension_numbers<[1], [0], [0], [1], [0, 0, 1, 1], [], []>} : vector<2x4xf32>, vector<4x2xf32>, vector<2x2xf32> -> vector<2x2xf32>
    %cst_43 = arith.constant 0.000000e+00 : f32
    %159 = vector.broadcast %cst_43 : f32 to vector<2x2xf32>
    %160 = arith.maximumf %158, %159 : vector<2x2xf32>
    %c0_44 = arith.constant 0 : index
    %c0_45 = arith.constant 0 : index
    %161 = vector.load %arg7[%c0_44, %c0_45] : memref<4x2xf32, #tpu.memory_space<vmem>>, vector<4x2xf32>
    %cst_46 = arith.constant dense<0.000000e+00> : vector<4x2xf32>
    %162 = tpu.matmul %161, %160, %cst_46 {dimension_numbers = #tpu.dot_dimension_numbers<[1], [0], [0], [1], [0, 0, 1, 1], [], []>} : vector<4x2xf32>, vector<2x2xf32>, vector<4x2xf32> -> vector<4x2xf32>
    %163 = vector.extract_strided_slice %162 {offsets = [0, 0], sizes = [4, 1], strides = [1, 1]} : vector<4x2xf32> to vector<4x1xf32>
    %164 = vector.extract_strided_slice %162 {offsets = [0, 1], sizes = [4, 1], strides = [1, 1]} : vector<4x2xf32> to vector<4x1xf32>
    %165 = arith.addf %163, %164 : vector<4x1xf32>
    %166 = arith.negf %165 : vector<4x1xf32>
    %167 = math.exp %166 : vector<4x1xf32>
    %cst_47 = arith.constant 1.000000e+00 : f32
    %168 = vector.broadcast %cst_47 : f32 to vector<4x1xf32>
    %169 = arith.addf %168, %167 : vector<4x1xf32>
    %170 = arith.divf %168, %169 : vector<4x1xf32>
    %171 = vector.broadcast %170 : vector<4x1xf32> to vector<4x256xf32>
    %172 = arith.mulf %149, %171 : vector<4x256xf32>
    %cst_48 = arith.constant dense<0.000000e+00> : vector<256xf32>
    %173 = vector.multi_reduction <add>, %172, %cst_48 [0] : vector<4x256xf32> to vector<256xf32>
    %174 = vector.shape_cast %173 : vector<256xf32> to vector<1x256xf32>
    %cst_49 = arith.constant 4.000000e+00 : f32
    %175 = vector.broadcast %cst_49 : f32 to vector<1x256xf32>
    %176 = arith.divf %174, %175 : vector<1x256xf32>
    %cst_50 = arith.constant dense<0xFF800000> : vector<256xf32>
    %177 = vector.multi_reduction <maximumf>, %172, %cst_50 [0] : vector<4x256xf32> to vector<256xf32>
    %178 = vector.shape_cast %177 : vector<256xf32> to vector<1x256xf32>
    %179 = tpu.concatenate %176, %178 in 0 : vector<1x256xf32>, vector<1x256xf32> -> vector<2x256xf32>
    %cst_51 = arith.constant 0.000000e+00 : f32
    %180 = vector.broadcast %cst_51 : f32 to vector<2x3xf32>
    %181 = tpu.concatenate %180, %179, %180 in 1 : vector<2x3xf32>, vector<2x256xf32>, vector<2x3xf32> -> vector<2x262xf32>
    %182 = vector.extract_strided_slice %181 {offsets = [0, 0], sizes = [2, 256], strides = [1, 1]} : vector<2x262xf32> to vector<2x256xf32>
    %183 = vector.broadcast %29 : vector<1x256xf32> to vector<2x256xf32>
    %184 = arith.mulf %182, %183 : vector<2x256xf32>
    %185 = vector.extract_strided_slice %181 {offsets = [0, 1], sizes = [2, 256], strides = [1, 1]} : vector<2x262xf32> to vector<2x256xf32>
    %186 = vector.broadcast %40 : vector<1x256xf32> to vector<2x256xf32>
    %187 = arith.mulf %185, %186 : vector<2x256xf32>
    %188 = vector.extract_strided_slice %181 {offsets = [0, 2], sizes = [2, 256], strides = [1, 1]} : vector<2x262xf32> to vector<2x256xf32>
    %189 = vector.broadcast %51 : vector<1x256xf32> to vector<2x256xf32>
    %190 = arith.mulf %188, %189 : vector<2x256xf32>
    %191 = vector.extract_strided_slice %181 {offsets = [0, 3], sizes = [2, 256], strides = [1, 1]} : vector<2x262xf32> to vector<2x256xf32>
    %192 = vector.extract_strided_slice %181 {offsets = [0, 4], sizes = [2, 256], strides = [1, 1]} : vector<2x262xf32> to vector<2x256xf32>
    %193 = vector.broadcast %62 : vector<1x256xf32> to vector<2x256xf32>
    %194 = arith.mulf %192, %193 : vector<2x256xf32>
    %195 = vector.extract_strided_slice %181 {offsets = [0, 5], sizes = [2, 256], strides = [1, 1]} : vector<2x262xf32> to vector<2x256xf32>
    %196 = vector.broadcast %73 : vector<1x256xf32> to vector<2x256xf32>
    %197 = arith.mulf %195, %196 : vector<2x256xf32>
    %198 = vector.extract_strided_slice %181 {offsets = [0, 6], sizes = [2, 256], strides = [1, 1]} : vector<2x262xf32> to vector<2x256xf32>
    %199 = vector.broadcast %84 : vector<1x256xf32> to vector<2x256xf32>
    %200 = arith.mulf %198, %199 : vector<2x256xf32>
    %201 = tpu.concatenate %184, %187, %190, %191, %194, %197, %200 in 0 : vector<2x256xf32>, vector<2x256xf32>, vector<2x256xf32>, vector<2x256xf32>, vector<2x256xf32>, vector<2x256xf32>, vector<2x256xf32> -> vector<14x256xf32>
    %c0_52 = arith.constant 0 : index
    %c0_53 = arith.constant 0 : index
    %202 = vector.load %arg8[%c0_52, %c0_53] : memref<7x14xf32, #tpu.memory_space<vmem>>, vector<7x14xf32>
    %cst_54 = arith.constant dense<0.000000e+00> : vector<7x256xf32>
    %203 = tpu.matmul %202, %201, %cst_54 {dimension_numbers = #tpu.dot_dimension_numbers<[1], [0], [0], [1], [0, 0, 1, 1], [], []>} : vector<7x14xf32>, vector<14x256xf32>, vector<7x256xf32> -> vector<7x256xf32>
    %cst_55 = arith.constant 0.000000e+00 : f32
    %204 = vector.broadcast %cst_55 : f32 to vector<7x48xf32>
    %205 = tpu.concatenate %204, %203, %204 in 1 : vector<7x48xf32>, vector<7x256xf32>, vector<7x48xf32> -> vector<7x352xf32>
    %cst_56 = arith.constant 0.000000e+00 : f32
    %206 = vector.broadcast %cst_56 : f32 to vector<1x256xf32>
    %207 = vector.extract_strided_slice %205 {offsets = [0, 0], sizes = [1, 256], strides = [1, 1]} : vector<7x352xf32> to vector<1x256xf32>
    %208 = arith.addf %206, %207 : vector<1x256xf32>
    %209 = vector.extract_strided_slice %205 {offsets = [1, 16], sizes = [1, 256], strides = [1, 1]} : vector<7x352xf32> to vector<1x256xf32>
    %210 = arith.addf %208, %209 : vector<1x256xf32>
    %211 = vector.extract_strided_slice %205 {offsets = [2, 32], sizes = [1, 256], strides = [1, 1]} : vector<7x352xf32> to vector<1x256xf32>
    %212 = arith.addf %210, %211 : vector<1x256xf32>
    %213 = vector.extract_strided_slice %205 {offsets = [3, 48], sizes = [1, 256], strides = [1, 1]} : vector<7x352xf32> to vector<1x256xf32>
    %214 = arith.addf %212, %213 : vector<1x256xf32>
    %215 = vector.extract_strided_slice %205 {offsets = [4, 64], sizes = [1, 256], strides = [1, 1]} : vector<7x352xf32> to vector<1x256xf32>
    %216 = arith.addf %214, %215 : vector<1x256xf32>
    %217 = vector.extract_strided_slice %205 {offsets = [5, 80], sizes = [1, 256], strides = [1, 1]} : vector<7x352xf32> to vector<1x256xf32>
    %218 = arith.addf %216, %217 : vector<1x256xf32>
    %219 = vector.extract_strided_slice %205 {offsets = [6, 96], sizes = [1, 256], strides = [1, 1]} : vector<7x352xf32> to vector<1x256xf32>
    %220 = arith.addf %218, %219 : vector<1x256xf32>
    %c0_57 = arith.constant 0 : index
    %c0_58 = arith.constant 0 : index
    %221 = vector.load %arg9[%c0_57, %c0_58] : memref<1x1xf32, #tpu.memory_space<vmem>>, vector<1x1xf32>
    %222 = vector.broadcast %221 : vector<1x1xf32> to vector<1x256xf32>
    %223 = arith.addf %220, %222 : vector<1x256xf32>
    %224 = arith.negf %223 : vector<1x256xf32>
    %225 = math.exp %224 : vector<1x256xf32>
    %cst_59 = arith.constant 1.000000e+00 : f32
    %226 = vector.broadcast %cst_59 : f32 to vector<1x256xf32>
    %227 = arith.addf %226, %225 : vector<1x256xf32>
    %228 = arith.divf %226, %227 : vector<1x256xf32>
    %229 = vector.broadcast %228 : vector<1x256xf32> to vector<4x256xf32>
    %230 = arith.mulf %172, %229 : vector<4x256xf32>
    %c0_60 = arith.constant 0 : index
    %c0_61 = arith.constant 0 : index
    %c0_62 = arith.constant 0 : index
    %231 = vector.load %arg10[%c0_60, %c0_61, %c0_62] : memref<1x4x256xf32, #tpu.memory_space<vmem>>, vector<1x4x256xf32>
    %232 = vector.shape_cast %231 : vector<1x4x256xf32> to vector<4x256xf32>
    %233 = vector.shape_cast %230 : vector<4x256xf32> to vector<1x4x256xf32>
    tpu.vector_store %arg10[%c0_60, %c0_61, %c0_62], %233 {strides = array<i32>} : memref<1x4x256xf32, #tpu.memory_space<vmem>>, vector<1x4x256xf32>,
    return
  }
  func.func @transform_0(%arg0: i32) -> (i32, i32, i32) {
    %c0_i32 = arith.constant 0 : i32
    %c0_i32_0 = arith.constant 0 : i32
    %c0_i32_1 = arith.constant 0 : i32
    return %arg0, %c0_i32, %c0_i32_0 : i32, i32, i32
  }
  func.func @transform_1(%arg0: i32) -> (i32, i32) {
    %c0_i32 = arith.constant 0 : i32
    %c0_i32_0 = arith.constant 0 : i32
    %c0_i32_1 = arith.constant 0 : i32
    return %c0_i32, %c0_i32_0 : i32, i32
  }
  func.func @transform_2(%arg0: i32) -> (i32, i32) {
    %c0_i32 = arith.constant 0 : i32
    %c0_i32_0 = arith.constant 0 : i32
    %c0_i32_1 = arith.constant 0 : i32
    return %c0_i32, %c0_i32_0 : i32, i32
  }
  func.func @transform_3(%arg0: i32) -> (i32, i32) {
    %c0_i32 = arith.constant 0 : i32
    %c0_i32_0 = arith.constant 0 : i32
    %c0_i32_1 = arith.constant 0 : i32
    return %c0_i32, %c0_i32_0 : i32, i32
  }
  func.func @transform_4(%arg0: i32) -> (i32, i32) {
    %c0_i32 = arith.constant 0 : i32
    %c0_i32_0 = arith.constant 0 : i32
    %c0_i32_1 = arith.constant 0 : i32
    return %c0_i32, %c0_i32_0 : i32, i32
  }
  func.func @transform_5(%arg0: i32) -> (i32, i32) {
    %c0_i32 = arith.constant 0 : i32
    %c0_i32_0 = arith.constant 0 : i32
    %c0_i32_1 = arith.constant 0 : i32
    return %c0_i32, %c0_i32_0 : i32, i32
  }
  func.func @transform_6(%arg0: i32) -> (i32, i32) {
    %c0_i32 = arith.constant 0 : i32
    %c0_i32_0 = arith.constant 0 : i32
    %c0_i32_1 = arith.constant 0 : i32
    return %c0_i32, %c0_i32_0 : i32, i32
  }
  func.func @transform_7(%arg0: i32) -> (i32, i32) {
    %c0_i32 = arith.constant 0 : i32
    %c0_i32_0 = arith.constant 0 : i32
    %c0_i32_1 = arith.constant 0 : i32
    return %c0_i32, %c0_i32_0 : i32, i32
  }
  func.func @transform_8(%arg0: i32) -> (i32, i32) {
    %c0_i32 = arith.constant 0 : i32
    %c0_i32_0 = arith.constant 0 : i32
    %c0_i32_1 = arith.constant 0 : i32
    return %c0_i32, %c0_i32_0 : i32, i32
  }
  func.func @transform_9(%arg0: i32) -> (i32, i32, i32) {
    %c0_i32 = arith.constant 0 : i32
    %c0_i32_0 = arith.constant 0 : i32
    %c0_i32_1 = arith.constant 0 : i32
    return %arg0, %c0_i32, %c0_i32_0 : i32, i32, i32
  }
}

</mosaic_0001>

<llo_original>
// kernel: basic_block_cbam_forward.1
$region0: #{basic_block_cbam_forward.1}
  #allocation0 [shape = 'u32[]', space=smem, size = 0x4, offset = 0x4, fixed_abs, tag = 'smem constant byte address 0x4 - core index']
  #allocation1 [shape = 'u32[144,128]{1,0:T(1,128)}', space=vmem, size = 0x12000, scoped, tag = 'internal scratch']
  #allocation2 [shape = 'f32[1,1]{1,0:T(1,128)S(1)}', space=vmem, size = 0x200, scoped, tag = 'scoped memory for basic_block_cbam_forward.1']
  %s0 = inlined_call_operand.vmem [shape: f32[2,4,256], index: 0, kind: input, shape index: {}]
  %s1 = inlined_call_operand.vmem [shape: bf16[4,36], index: 1, kind: input, shape index: {}]
  %s2 = inlined_call_operand.vmem [shape: f32[4,1], index: 2, kind: input, shape index: {}]
  %s3 = inlined_call_operand.vmem [shape: bf16[4,36], index: 3, kind: input, shape index: {}]
  %s4 = inlined_call_operand.vmem [shape: f32[4,1], index: 4, kind: input, shape index: {}]
  %s5 = inlined_call_operand.vmem [shape: f32[2,4], index: 5, kind: input, shape index: {}]
  %s6 = inlined_call_operand.vmem [shape: f32[4,2], index: 6, kind: input, shape index: {}]
  %s7 = inlined_call_operand.vmem [shape: f32[7,14], index: 7, kind: input, shape index: {}]
  %s8 = inlined_call_operand.<no memory space> [shape: f32[1,1], index: 8, kind: input, shape index: {}]
  %s9 = inlined_call_operand.vmem [shape: f32[2,4,256], index: 9, kind: output, shape index: {}]
  %s10 = sld [smem:[#allocation0]]
  $region69: #{basic_block_cbam_forward.1} parent=0
    _
  %s12 = ssub.s32 1, %s10
  %s13 = scalar_select 0, %s12, %s10
  %v14 = vstv %s8
  %15 = vst [vmem:[#allocation2] sm:$0x1] %v14
  loop: start=0, step=1, limit=4
  $region2: #{basic_block_cbam_forward.1} parent=0 // loop_pre_header
    _
  $region3: #{basic_block_cbam_forward.1} parent=0 // loop_header
    %s17 = sphi 0, %s21
    %p18 = scmp.ge.s32.totalorder %s17, 4
    %s27 = sphi 0, %s29
    %s30 = sphi 0, %s27
    %s31 = sphi 0, %s30
    %s47 = sphi 0, %s31
    %s51 = sphi 0, %s51
    %s53 = sphi 0, %s51
    %s54 = sphi 0, %s53
    %s68 = sphi 0, %s54
    %s72 = sphi 0, %s72
    %s74 = sphi 0, %s72
    %s75 = sphi 0, %s74
    %s89 = sphi 0, %s75
    %s93 = sphi 0, %s93
    %s95 = sphi 0, %s93
    %s96 = sphi 0, %s95
    %s110 = sphi 0, %s96
    %s114 = sphi 0, %s114
    %s116 = sphi 0, %s114
    %s117 = sphi 0, %s116
    %s131 = sphi 0, %s117
    %s135 = sphi 0, %s135
    %s137 = sphi 0, %s135
    %s138 = sphi 0, %s137
    %s152 = sphi 0, %s138
    %s156 = sphi 0, %s156
    %s158 = sphi 0, %s156
    %s159 = sphi 0, %s158
    %s173 = sphi 0, %s159
    %s177 = sphi 0, %s177
    %s179 = sphi 0, %s177
    %s180 = sphi 0, %s179
    %s194 = sphi 0, %s180
    %s198 = sphi 0, %s198
    %s200 = sphi 0, %s198
    %s201 = sphi 0, %s200
    %s215 = sphi 0, %s201
    %s221 = sphi 0, %s223
    %s224 = sphi 0, %s221
    %s225 = sphi 0, %s224
    %s241 = sphi 0, %s225
  $region4: #{basic_block_cbam_forward.1} parent=0 // loop_header_branch
    %20 = sbr.rel (%p18) target = $region8
  $region5: #{basic_block_cbam_forward.1} parent=0 // loop_body
    %s22 = ssub.s32 %s17, 1
    %s23 = ssub.s32 %s17, 2
    %s24 = sadd.s32 %s17, 1
    %s25 = ssub.s32 %s17, %s24
    %p26 = scmp.eq.s32.totalorder %s25, 0
    %s28 = sadd.s32 %s27, 1
    %s29 = scalar_select %p26, %s27, %s28
    %p32 = pneg %p26
    %p33 = scmp.eq.s32.totalorder %s17, 1
    %p34 = por %p32, %p33
    %p35 = scmp.ne.s32.totalorder %s27, %s30
    %p36 = scmp.eq.s32.totalorder %s17, 0
    %p37 = por %p35, %p36
    %p38 = scmp.ne.s32.totalorder %s27, %s30
    %p39 = scmp.eq.s32.totalorder %s22, 1
    %p40 = por %p38, %p39
    %p41 = scmp.ne.s32.totalorder %s30, %s31
    %p42 = scmp.eq.s32.totalorder %s22, 0
    %p43 = por %p41, %p42
    %p44 = scmp.ne.s32.totalorder %s30, %s31
    %p45 = scmp.eq.s32.totalorder %s23, 1
    %p46 = por %p44, %p45
    %p48 = scmp.ne.s32.totalorder %s31, %s47
    %p49 = scmp.eq.s32.totalorder %s23, 0
    %p50 = por %p48, %p49
    %s52 = sadd.s32 %s51, 1
    %p55 = scmp.eq.s32.totalorder %s17, 1
    %p56 = scmp.ne.s32.totalorder %s51, %s53
    %p57 = scmp.eq.s32.totalorder %s17, 0
    %p58 = por %p56, %p57
    %p59 = scmp.ne.s32.totalorder %s51, %s53
    %p60 = scmp.eq.s32.totalorder %s22, 1
    %p61 = por %p59, %p60
    %p62 = scmp.ne.s32.totalorder %s53, %s54
    %p63 = scmp.eq.s32.totalorder %s22, 0
    %p64 = por %p62, %p63
    %p65 = scmp.ne.s32.totalorder %s53, %s54
    %p66 = scmp.eq.s32.totalorder %s23, 1
    %p67 = por %p65, %p66
    %p69 = scmp.ne.s32.totalorder %s54, %s68
    %p70 = scmp.eq.s32.totalorder %s23, 0
    %p71 = por %p69, %p70
    %s73 = sadd.s32 %s72, 1
    %p76 = scmp.eq.s32.totalorder %s17, 1
    %p77 = scmp.ne.s32.totalorder %s72, %s74
    %p78 = scmp.eq.s32.totalorder %s17, 0
    %p79 = por %p77, %p78
    %p80 = scmp.ne.s32.totalorder %s72, %s74
    %p81 = scmp.eq.s32.totalorder %s22, 1
    %p82 = por %p80, %p81
    %p83 = scmp.ne.s32.totalorder %s74, %s75
    %p84 = scmp.eq.s32.totalorder %s22, 0
    %p85 = por %p83, %p84
    %p86 = scmp.ne.s32.totalorder %s74, %s75
    %p87 = scmp.eq.s32.totalorder %s23, 1
    %p88 = por %p86, %p87
    %p90 = scmp.ne.s32.totalorder %s75, %s89
    %p91 = scmp.eq.s32.totalorder %s23, 0
    %p92 = por %p90, %p91
    %s94 = sadd.s32 %s93, 1
    %p97 = scmp.eq.s32.totalorder %s17, 1
    %p98 = scmp.ne.s32.totalorder %s93, %s95
    %p99 = scmp.eq.s32.totalorder %s17, 0
    %p100 = por %p98, %p99
    %p101 = scmp.ne.s32.totalorder %s93, %s95
    %p102 = scmp.eq.s32.totalorder %s22, 1
    %p103 = por %p101, %p102
    %p104 = scmp.ne.s32.totalorder %s95, %s96
    %p105 = scmp.eq.s32.totalorder %s22, 0
    %p106 = por %p104, %p105
    %p107 = scmp.ne.s32.totalorder %s95, %s96
    %p108 = scmp.eq.s32.totalorder %s23, 1
    %p109 = por %p107, %p108
    %p111 = scmp.ne.s32.totalorder %s96, %s110
    %p112 = scmp.eq.s32.totalorder %s23, 0
    %p113 = por %p111, %p112
    %s115 = sadd.s32 %s114, 1
    %p118 = scmp.eq.s32.totalorder %s17, 1
    %p119 = scmp.ne.s32.totalorder %s114, %s116
    %p120 = scmp.eq.s32.totalorder %s17, 0
    %p121 = por %p119, %p120
    %p122 = scmp.ne.s32.totalorder %s114, %s116
    %p123 = scmp.eq.s32.totalorder %s22, 1
    %p124 = por %p122, %p123
    %p125 = scmp.ne.s32.totalorder %s116, %s117
    %p126 = scmp.eq.s32.totalorder %s22, 0
    %p127 = por %p125, %p126
    %p128 = scmp.ne.s32.totalorder %s116, %s117
    %p129 = scmp.eq.s32.totalorder %s23, 1
    %p130 = por %p128, %p129
    %p132 = scmp.ne.s32.totalorder %s117, %s131
    %p133 = scmp.eq.s32.totalorder %s23, 0
    %p134 = por %p132, %p133
    %s136 = sadd.s32 %s135, 1
    %p139 = scmp.eq.s32.totalorder %s17, 1
    %p140 = scmp.ne.s32.totalorder %s135, %s137
    %p141 = scmp.eq.s32.totalorder %s17, 0
    %p142 = por %p140, %p141
    %p143 = scmp.ne.s32.totalorder %s135, %s137
    %p144 = scmp.eq.s32.totalorder %s22, 1
    %p145 = por %p143, %p144
    %p146 = scmp.ne.s32.totalorder %s137, %s138
    %p147 = scmp.eq.s32.totalorder %s22, 0
    %p148 = por %p146, %p147
    %p149 = scmp.ne.s32.totalorder %s137, %s138
    %p150 = scmp.eq.s32.totalorder %s23, 1
    %p151 = por %p149, %p150
    %p153 = scmp.ne.s32.totalorder %s138, %s152
    %p154 = scmp.eq.s32.totalorder %s23, 0
    %p155 = por %p153, %p154
    %s157 = sadd.s32 %s156, 1
    %p160 = scmp.eq.s32.totalorder %s17, 1
    %p161 = scmp.ne.s32.totalorder %s156, %s158
    %p162 = scmp.eq.s32.totalorder %s17, 0
    %p163 = por %p161, %p162
    %p164 = scmp.ne.s32.totalorder %s156, %s158
    %p165 = scmp.eq.s32.totalorder %s22, 1
    %p166 = por %p164, %p165
    %p167 = scmp.ne.s32.totalorder %s158, %s159
    %p168 = scmp.eq.s32.totalorder %s22, 0
    %p169 = por %p167, %p168
    %p170 = scmp.ne.s32.totalorder %s158, %s159
    %p171 = scmp.eq.s32.totalorder %s23, 1
    %p172 = por %p170, %p171
    %p174 = scmp.ne.s32.totalorder %s159, %s173
    %p175 = scmp.eq.s32.totalorder %s23, 0
    %p176 = por %p174, %p175
    %s178 = sadd.s32 %s177, 1
    %p181 = scmp.eq.s32.totalorder %s17, 1
    %p182 = scmp.ne.s32.totalorder %s177, %s179
    %p183 = scmp.eq.s32.totalorder %s17, 0
    %p184 = por %p182, %p183
    %p185 = scmp.ne.s32.totalorder %s177, %s179
    %p186 = scmp.eq.s32.totalorder %s22, 1
    %p187 = por %p185, %p186
    %p188 = scmp.ne.s32.totalorder %s179, %s180
    %p189 = scmp.eq.s32.totalorder %s22, 0
    %p190 = por %p188, %p189
    %p191 = scmp.ne.s32.totalorder %s179, %s180
    %p192 = scmp.eq.s32.totalorder %s23, 1
    %p193 = por %p191, %p192
    %p195 = scmp.ne.s32.totalorder %s180, %s194
    %p196 = scmp.eq.s32.totalorder %s23, 0
    %p197 = por %p195, %p196
    %s199 = sadd.s32 %s198, 1
    %p202 = scmp.eq.s32.totalorder %s17, 1
    %p203 = scmp.ne.s32.totalorder %s198, %s200
    %p204 = scmp.eq.s32.totalorder %s17, 0
    %p205 = por %p203, %p204
    %p206 = scmp.ne.s32.totalorder %s198, %s200
    %p207 = scmp.eq.s32.totalorder %s22, 1
    %p208 = por %p206, %p207
    %p209 = scmp.ne.s32.totalorder %s200, %s201
    %p210 = scmp.eq.s32.totalorder %s22, 0
    %p211 = por %p209, %p210
    %p212 = scmp.ne.s32.totalorder %s200, %s201
    %p213 = scmp.eq.s32.totalorder %s23, 1
    %p214 = por %p212, %p213
    %p216 = scmp.ne.s32.totalorder %s201, %s215
    %p217 = scmp.eq.s32.totalorder %s23, 0
    %p218 = por %p216, %p217
    %s219 = ssub.s32 %s17, %s24
    %p220 = scmp.eq.s32.totalorder %s219, 0
    %s222 = sadd.s32 %s221, 1
    %s223 = scalar_select %p220, %s221, %s222
    %p226 = pneg %p220
    %p227 = scmp.eq.s32.totalorder %s17, 1
    %p228 = por %p226, %p227
    %p229 = scmp.ne.s32.totalorder %s221, %s224
    %p230 = scmp.eq.s32.totalorder %s17, 0
    %p231 = por %p229, %p230
    %p232 = scmp.ne.s32.totalorder %s221, %s224
    %p233 = scmp.eq.s32.totalorder %s22, 1
    %p234 = por %p232, %p233
    %p235 = scmp.ne.s32.totalorder %s224, %s225
    %p236 = scmp.eq.s32.totalorder %s22, 0
    %p237 = por %p235, %p236
    %p238 = scmp.ne.s32.totalorder %s224, %s225
    %p239 = scmp.eq.s32.totalorder %s23, 1
    %p240 = por %p238, %p239
    %p242 = scmp.ne.s32.totalorder %s225, %s241
    %p243 = scmp.eq.s32.totalorder %s23, 0
    %p244 = por %p242, %p243
    %p245 = scmp.le.s32.totalorder 1, %s17
    %p246 = scmp.lt.s32.totalorder %s17, 3
    %p247 = pnand %p245, %p246
    %p248 = pneg %p247
    // Predicated region
    $region9: #{basic_block_cbam_forward.1} parent=5 // pred_check
      _
    $region10: #{basic_block_cbam_forward.1} parent=5 // pred_check_branch
      %250 = sbr.rel (%p247) target = $region12
    $region11: #{basic_block_cbam_forward.1} parent=5 // pred_region
      %s251 = ssub.s32 %s17, 1
      // Predicated region
      $region13: #{basic_block_cbam_forward.1} parent=11 // pred_check
        %p252 = pneg %p64
      $region14: #{basic_block_cbam_forward.1} parent=11 // pred_check_branch
        %254 = sbr.rel (%p252) target = $region16
      $region15: #{basic_block_cbam_forward.1} parent=11 // pred_region
        _
      $region16: #{basic_block_cbam_forward.1} parent=11 // pred_fallthru
        _
      // Predicated region
      $region17: #{basic_block_cbam_forward.1} parent=11 // pred_check
        %p255 = pneg %p85
      $region18: #{basic_block_cbam_forward.1} parent=11 // pred_check_branch
        %257 = sbr.rel (%p255) target = $region20
      $region19: #{basic_block_cbam_forward.1} parent=11 // pred_region
        _
      $region20: #{basic_block_cbam_forward.1} parent=11 // pred_fallthru
        _
      // Predicated region
      $region21: #{basic_block_cbam_forward.1} parent=11 // pred_check
        %p258 = pneg %p106
      $region22: #{basic_block_cbam_forward.1} parent=11 // pred_check_branch
        %260 = sbr.rel (%p258) target = $region24
      $region23: #{basic_block_cbam_forward.1} parent=11 // pred_region
        _
      $region24: #{basic_block_cbam_forward.1} parent=11 // pred_fallthru
        _
      // Predicated region
      $region25: #{basic_block_cbam_forward.1} parent=11 // pred_check
        %p261 = pneg %p127
      $region26: #{basic_block_cbam_forward.1} parent=11 // pred_check_branch
        %263 = sbr.rel (%p261) target = $region28
      $region27: #{basic_block_cbam_forward.1} parent=11 // pred_region
        _
      $region28: #{basic_block_cbam_forward.1} parent=11 // pred_fallthru
        _
      // Predicated region
      $region29: #{basic_block_cbam_forward.1} parent=11 // pred_check
        %p264 = pneg %p148
      $region30: #{basic_block_cbam_forward.1} parent=11 // pred_check_branch
        %266 = sbr.rel (%p264) target = $region32
      $region31: #{basic_block_cbam_forward.1} parent=11 // pred_region
        _
      $region32: #{basic_block_cbam_forward.1} parent=11 // pred_fallthru
        _
      // Predicated region
      $region33: #{basic_block_cbam_forward.1} parent=11 // pred_check
        %p267 = pneg %p169
      $region34: #{basic_block_cbam_forward.1} parent=11 // pred_check_branch
        %269 = sbr.rel (%p267) target = $region36
      $region35: #{basic_block_cbam_forward.1} parent=11 // pred_region
        _
      $region36: #{basic_block_cbam_forward.1} parent=11 // pred_fallthru
        _
      // Predicated region
      $region37: #{basic_block_cbam_forward.1} parent=11 // pred_check
        %p270 = pneg %p190
      $region38: #{basic_block_cbam_forward.1} parent=11 // pred_check_branch
        %272 = sbr.rel (%p270) target = $region40
      $region39: #{basic_block_cbam_forward.1} parent=11 // pred_region
        _
      $region40: #{basic_block_cbam_forward.1} parent=11 // pred_fallthru
        _
      // Predicated region
      $region41: #{basic_block_cbam_forward.1} parent=11 // pred_check
        %p273 = pneg %p211
      $region42: #{basic_block_cbam_forward.1} parent=11 // pred_check_branch
        %275 = sbr.rel (%p273) target = $region44
      $region43: #{basic_block_cbam_forward.1} parent=11 // pred_region
        _
      $region44: #{basic_block_cbam_forward.1} parent=11 // pred_fallthru
        _
    $region12: #{basic_block_cbam_forward.1} parent=5 // pred_fallthru
      _
    %p276 = scmp.lt.s32.totalorder %s17, 2
    // Predicated region
    $region45: #{basic_block_cbam_forward.1} parent=5 // pred_check
      %p277 = pneg %p276
    $region46: #{basic_block_cbam_forward.1} parent=5 // pred_check_branch
      %279 = sbr.rel (%p277) target = $region48
    $region47: #{basic_block_cbam_forward.1} parent=5 // pred_region
      // Predicated region
      $region49: #{basic_block_cbam_forward.1} parent=47 // pred_check
        %p280 = pneg %p37
      $region50: #{basic_block_cbam_forward.1} parent=47 // pred_check_branch
        %282 = sbr.rel (%p280) target = $region52
      $region51: #{basic_block_cbam_forward.1} parent=47 // pred_region
        %p283 = scmp.lt.s32.totalorder %s17, 1
        %s284 = scalar_select %p283, %s17, 1
        %s285 = smul.addr %s284, 2
        %s286 = smul.addr %s285, 4
        %s287 = scalar_lea.vmem %s0, %s286
      $region52: #{basic_block_cbam_forward.1} parent=47 // pred_fallthru
        _
    $region48: #{basic_block_cbam_forward.1} parent=5 // pred_fallthru
      _
    %p288 = scmp.le.s32.totalorder 1, %s17
    %p289 = scmp.lt.s32.totalorder %s17, 3
    %p290 = pnand %p288, %p289
    %p291 = pneg %p290
    // Predicated region
    $region53: #{basic_block_cbam_forward.1} parent=5 // pred_check
      _
    $region54: #{basic_block_cbam_forward.1} parent=5 // pred_check_branch
      %293 = sbr.rel (%p290) target = $region56
    $region55: #{basic_block_cbam_forward.1} parent=5 // pred_region
      %s294 = ssub.s32 %s17, 1
      %p295 = scmp.lt.s32.totalorder %s22, 1
      %s296 = scalar_select %p295, %s22, 1
      %s297 = smul.addr %s296, 2
      %s298 = smul.addr %s297, 4
      %s299 = scalar_lea.vmem %s0, %s298
      %p300 = pneg %p43
      %p301 = pneg %p40
      %p302 = pneg %p64
      %p303 = pneg %p61
      %p304 = pneg %p85
      %p305 = pneg %p82
      %p306 = pneg %p106
      %p307 = pneg %p103
      %p308 = pneg %p127
      %p309 = pneg %p124
      %p310 = pneg %p148
      %p311 = pneg %p145
      %p312 = pneg %p169
      %p313 = pneg %p166
      %p314 = pneg %p190
      %p315 = pneg %p187
      %p316 = pneg %p211
      %p317 = pneg %p208
      %p318 = pneg %p237
      %p319 = pneg %p234
      %p320 = scmp.lt.s32.totalorder %s22, 1
      %s321 = scalar_select %p320, %s22, 1
      %s322 = smul.addr %s321, 2
      %s323 = smul.addr %s322, 4
      %s324 = scalar_lea.vmem %s9, %s323
      %p325 = scmp.lt.s32.totalorder %s22, 1
      %s326 = scalar_select %p325, %s22, 1
      %s327 = smul.addr %s326, 2
      %s328 = smul.addr %s327, 4
      %s329 = scalar_lea.vmem %s0, %s328
      %p330 = scmp.lt.s32.totalorder %s22, 1
      %s331 = scalar_select %p330, %s22, 1
      %s332 = smul.addr %s331, 2
      %s333 = smul.addr %s332, 4
      %s334 = scalar_lea.vmem %s9, %s333
      %v336 = vld [vmem:[%s329] sm:$0xff]
      %v337 = vlaneseq
      %v338 = vand.u32 %v337, 127
      %v339 = vadd.s32 %v338, 128
      %vm340 = vcmp.lt.s32.totalorder %v338, 0
      %v341 = vsub.s32 0, %v338
      %v342 = vsel %vm340, %v341, %v338
      %v343 = vshrl.u32 %v342, 4
      %v344 = vand.u32 %v342, 15
      %v345 = vsub.s32 0, %v344
      %v346 = vsel %vm340, %v345, %v344
      %vm347 = vcmp.lt.s32.totalorder %v339, 0
      %v348 = vsub.s32 0, %v339
      %v349 = vsel %vm347, %v348, %v339
      %v350 = vshrl.u32 %v349, 4
      %v351 = vand.u32 %v349, 15
      %v352 = vsub.s32 0, %v351
      %v353 = vsel %vm347, %v352, %v351
      %vm354 = vcmp.ne.s32.totalorder %v346, 0
      %vm355 = vcmp.ne.s32.totalorder %v353, 0
      %vm356 = vcmp.lt.s32.totalorder %v346, 0
      %vm357 = vcmp.lt.s32.totalorder %v353, 0
      %vm358 = vmand %vm356, %vm354
      %vm359 = vmand %vm357, %vm355
      %v360 = vadd.s32 %v346, 16
      %v361 = vadd.s32 %v353, 16
      %v362 = vsel %vm358, %v360, %v346
      %v363 = vsel %vm359, %v361, %v353
      %v364 = vadd.s32 %v362, 4294967293
      %v365 = vadd.s32 %v363, 4294967293
      %vm366 = vcmp.ge.s32.totalorder %v364, 0
      %vm367 = vcmp.ge.s32.totalorder %v365, 0
      %vm368 = vcmp.lt.s32.totalorder %v364, 16
      %vm369 = vcmp.lt.s32.totalorder %v365, 16
      %vm370 = vmand %vm366, %vm368
      %vm371 = vmand %vm367, %vm369
      %v372 = vsel %vm370, 1, 0
      %v373 = vsel %vm371, 1, 0
      %v374 = vcvt.s32.f32 %v372
      %v375 = vcvt.s32.f32 %v373
      %v376 = vadd.s32 %v362, 4294967294
      %v377 = vadd.s32 %v363, 4294967294
      %vm378 = vcmp.ge.s32.totalorder %v376, 0
      %vm379 = vcmp.ge.s32.totalorder %v377, 0
      %vm380 = vcmp.lt.s32.totalorder %v376, 16
      %vm381 = vcmp.lt.s32.totalorder %v377, 16
      %vm382 = vmand %vm378, %vm380
      %vm383 = vmand %vm379, %vm381
      %v384 = vsel %vm382, 1, 0
      %v385 = vsel %vm383, 1, 0
      %v386 = vcvt.s32.f32 %v384
      %v387 = vcvt.s32.f32 %v385
      %v388 = vadd.s32 %v362, 4294967295
      %v389 = vadd.s32 %v363, 4294967295
      %vm390 = vcmp.ge.s32.totalorder %v388, 0
      %vm391 = vcmp.ge.s32.totalorder %v389, 0
      %vm392 = vcmp.lt.s32.totalorder %v388, 16
      %vm393 = vcmp.lt.s32.totalorder %v389, 16
      %vm394 = vmand %vm390, %vm392
      %vm395 = vmand %vm391, %vm393
      %v396 = vsel %vm394, 1, 0
      %v397 = vsel %vm395, 1, 0
      %v398 = vcvt.s32.f32 %v396
      %v399 = vcvt.s32.f32 %v397
      %v400 = vadd.s32 %v362, 1
      %v401 = vadd.s32 %v363, 1
      %vm402 = vcmp.ge.s32.totalorder %v400, 0
      %vm403 = vcmp.ge.s32.totalorder %v401, 0
      %vm404 = vcmp.lt.s32.totalorder %v400, 16
      %vm405 = vcmp.lt.s32.totalorder %v401, 16
      %vm406 = vmand %vm402, %vm404
      %vm407 = vmand %vm403, %vm405
      %v408 = vsel %vm406, 1, 0
      %v409 = vsel %vm407, 1, 0
      %v410 = vcvt.s32.f32 %v408
      %v411 = vcvt.s32.f32 %v409
      %v412 = vadd.s32 %v362, 2
      %v413 = vadd.s32 %v363, 2
      %vm414 = vcmp.ge.s32.totalorder %v412, 0
      %vm415 = vcmp.ge.s32.totalorder %v413, 0
      %vm416 = vcmp.lt.s32.totalorder %v412, 16
      %vm417 = vcmp.lt.s32.totalorder %v413, 16
      %vm418 = vmand %vm414, %vm416
      %vm419 = vmand %vm415, %vm417
      %v420 = vsel %vm418, 1, 0
      %v421 = vsel %vm419, 1, 0
      %v422 = vcvt.s32.f32 %v420
      %v423 = vcvt.s32.f32 %v421
      %v424 = vadd.s32 %v362, 3
      %v425 = vadd.s32 %v363, 3
      %vm426 = vcmp.ge.s32.totalorder %v424, 0
      %vm427 = vcmp.ge.s32.totalorder %v425, 0
      %vm428 = vcmp.lt.s32.totalorder %v424, 16
      %vm429 = vcmp.lt.s32.totalorder %v425, 16
      %vm430 = vmand %vm426, %vm428
      %vm431 = vmand %vm427, %vm429
      %v432 = vsel %vm430, 1, 0
      %v433 = vsel %vm431, 1, 0
      %v434 = vcvt.s32.f32 %v432
      %v435 = vcvt.s32.f32 %v433
      %v437 = vcombine.high %v336, %v336
      %438 = vrot.lane.b32.xlu0 %v336, 17
      %v439 = vpop.permute.xlu0 %438
      %440 = vrot.lane.b32.xlu0 %v437, 17
      %v441 = vpop.permute.xlu0 %440
      %vm442 = vcmask 138240
      %v443 = vsel %vm442, %v439, %v441
      %v447 = vsel %vm442, 0.0, %v439
      %v448 = vsel %vm442, %v441, 0.0
      %v449 = vmul.f32 %v447, %v398
      %v450 = vmul.f32 %v443, %v399
      %453 = vrot.lane.b32.xlu0 %v410, 2
      %v454 = vpop.permute.xlu0 %453
      %455 = vrot.lane.b32.xlu0 %v411, 2
      %v456 = vpop.permute.xlu0 %455
      %vm457 = vcmask 15360
      %v458 = vsel %vm457, %v454, %v456
      %v462 = vmul.f32 %v447, %v454
      %v463 = vmul.f32 %v443, %v458
      %v464 = vmul.f32 %v448, %v456
      %467 = vrot.lane.b32.xlu0 %v398, 16
      %v468 = vpop.permute.xlu0 %467
      %469 = vrot.lane.b32.xlu0 %v399, 16
      %v470 = vpop.permute.xlu0 %469
      %vm471 = vcmask 130048
      %v472 = vsel %vm471, %v468, %v470
      %v476 = vmul.f32 %v447, %v468
      %v477 = vmul.f32 %v443, %v472
      %v478 = vmul.f32 %v448, %v470
      %479 = vrot.lane.b32.xlu0 %v410, 18
      %v480 = vpop.permute.xlu0 %479
      %481 = vrot.lane.b32.xlu0 %v411, 18
      %v482 = vpop.permute.xlu0 %481
      %vm483 = vcmask 146432
      %v484 = vsel %vm483, %v480, %v482
      %v488 = vmul.f32 %v447, %v480
      %v489 = vmul.f32 %v443, %v484
      %v490 = vmul.f32 %v448, %v482
      %491 = vrot.lane.b32.xlu0 %v398, 32
      %v492 = vpop.permute.xlu0 %491
      %493 = vrot.lane.b32.xlu0 %v399, 32
      %v494 = vpop.permute.xlu0 %493
      %vm495 = vcmask 261120
      %v496 = vsel %vm495, %v492, %v494
      %v500 = vmul.f32 %v447, %v492
      %v501 = vmul.f32 %v443, %v496
      %v502 = vmul.f32 %v448, %v494
      %503 = vrot.lane.b32.xlu0 %v410, 34
      %v504 = vpop.permute.xlu0 %503
      %505 = vrot.lane.b32.xlu0 %v411, 34
      %v506 = vpop.permute.xlu0 %505
      %vm507 = vcmask 277504
      %v508 = vsel %vm507, %v504, %v506
      %v512 = vmul.f32 %v447, %v504
      %v513 = vmul.f32 %v443, %v508
      %v514 = vmul.f32 %v448, %v506
      %v517 = vrot.slane %v447, 4
      %v518 = vrot.slane %v443, 4
      %v519 = vrot.slane %v448, 4
      %520 = vrot.lane.b32.xlu0 %v517, 127
      %v521 = vpop.permute.xlu0 %520
      %522 = vrot.lane.b32.xlu0 %v518, 127
      %v523 = vpop.permute.xlu0 %522
      %524 = vrot.lane.b32.xlu0 %v519, 127
      %v525 = vpop.permute.xlu0 %524
      %vm526 = vcmask 1039360
      %v527 = vsel %vm526, %v521, %v523
      %v528 = vsel %vm526, %v523, %v525
      %534 = vrot.lane.b32.xlu0 %v462, 126
      %v535 = vpop.permute.xlu0 %534
      %536 = vrot.lane.b32.xlu0 %v463, 126
      %v537 = vpop.permute.xlu0 %536
      %538 = vrot.lane.b32.xlu0 %v464, 126
      %v539 = vpop.permute.xlu0 %538
      %vm540 = vcmask 1031168
      %v541 = vsel %vm540, %v535, %v537
      %v542 = vsel %vm540, %v537, %v539
      %v548 = vrot.slane %v476, 4
      %v549 = vrot.slane %v477, 4
      %v550 = vrot.slane %v478, 4
      %551 = vrot.lane.b32.xlu0 %v548, 112
      %v552 = vpop.permute.xlu0 %551
      %553 = vrot.lane.b32.xlu0 %v549, 112
      %v554 = vpop.permute.xlu0 %553
      %555 = vrot.lane.b32.xlu0 %v550, 112
      %v556 = vpop.permute.xlu0 %555
      %vm557 = vcmask 916480
      %v558 = vsel %vm557, %v552, %v554
      %v559 = vsel %vm557, %v554, %v556
      %562 = vrot.lane.b32.xlu0 %v447, 111
      %v563 = vpop.permute.xlu0 %562
      %564 = vrot.lane.b32.xlu0 %v443, 111
      %v565 = vpop.permute.xlu0 %564
      %566 = vrot.lane.b32.xlu0 %v448, 111
      %v567 = vpop.permute.xlu0 %566
      %vm568 = vcmask 908288
      %v569 = vsel %vm568, %v563, %v565
      %v570 = vsel %vm568, %v565, %v567
      %v576 = vrot.slane %v488, 4
      %v577 = vrot.slane %v489, 4
      %v578 = vrot.slane %v490, 4
      %579 = vrot.lane.b32.xlu0 %v576, 110
      %v580 = vpop.permute.xlu0 %579
      %581 = vrot.lane.b32.xlu0 %v577, 110
      %v582 = vpop.permute.xlu0 %581
      %583 = vrot.lane.b32.xlu0 %v578, 110
      %v584 = vpop.permute.xlu0 %583
      %vm585 = vcmask 900096
      %v586 = vsel %vm585, %v580, %v582
      %v587 = vsel %vm585, %v582, %v584
      %593 = vrot.lane.b32.xlu0 %v500, 96
      %v594 = vpop.permute.xlu0 %593
      %595 = vrot.lane.b32.xlu0 %v501, 96
      %v596 = vpop.permute.xlu0 %595
      %597 = vrot.lane.b32.xlu0 %v502, 96
      %v598 = vpop.permute.xlu0 %597
      %vm599 = vcmask 785408
      %v600 = vsel %vm599, %v594, %v596
      %v601 = vsel %vm599, %v596, %v598
      %604 = vrot.lane.b32.xlu0 %v517, 95
      %v605 = vpop.permute.xlu0 %604
      %606 = vrot.lane.b32.xlu0 %v518, 95
      %v607 = vpop.permute.xlu0 %606
      %608 = vrot.lane.b32.xlu0 %v519, 95
      %v609 = vpop.permute.xlu0 %608
      %vm610 = vcmask 777216
      %v611 = vsel %vm610, %v605, %v607
      %v612 = vsel %vm610, %v607, %v609
      %618 = vrot.lane.b32.xlu0 %v512, 94
      %v619 = vpop.permute.xlu0 %618
      %620 = vrot.lane.b32.xlu0 %v513, 94
      %v621 = vpop.permute.xlu0 %620
      %622 = vrot.lane.b32.xlu0 %v514, 94
      %v623 = vpop.permute.xlu0 %622
      %vm624 = vcmask 769024
      %v625 = vsel %vm624, %v619, %v621
      %v626 = vsel %vm624, %v621, %v623
      %vm629 = vcmask 1043456
      %v630 = vsel %vm629, %v449, %v527
      %v631 = vsel %vm629, %v450, %v528
      %v632 = vsel %vm629, %v541, %v558
      %v633 = vsel %vm629, %v542, %v559
      %v634 = vsel %vm629, %v569, %v586
      %v635 = vsel %vm629, %v570, %v587
      %v636 = vsel %vm629, %v600, %v611
      %v637 = vsel %vm629, %v601, %v612
      %v638 = vpack.c.bf16 %v632, %v630
      %v639 = vpack.c.bf16 %v633, %v631
      %v640 = vpack.c.bf16 %v636, %v634
      %v641 = vpack.c.bf16 %v637, %v635
      %v642 = vpack.c.bf16 %v625, %v625
      %v643 = vpack.c.bf16 %v626, %v626
      %v644 = vld [vmem:[%s1] sm:$0x3]
      %v645 = vld [vmem:[%s2] sm:$0xf]
      %647 = vset.pattern.permute.xlu0 0
      %648 = vperm.xlu0 %647, %v645
      %v649 = vpop.permute.xlu0 %648
      %vm651 = vcmask 293888
      %v653 = vsel %vm651, %v644, 0
      %vm655 = vcmask 1041408
      %v657 = vsel %vm655, %v642, 0
      %v660 = vsel %vm655, %v643, 0
      %662 = vmatprep.subr.bf16.mxu0 %v639
      %663 = vmatpush1.bf16.msra.mxu0 %v638
      %664 = vmatprep.subr.bf16.mxu0 %v641
      %665 = vmatpush1.bf16.msra.mxu0 %v640
      %666 = vmatprep.subr.bf16.mxu0 %v660
      %667 = vmatpush1.bf16.msra.mxu0 %v657
      %668 = vmatprep.subr.bf16.mxu0 0
      %669 = vmatpush1.bf16.msra.mxu0 0
      %670 = vmatprep.subr.bf16.mxu0 0
      %671 = vmatpush1.bf16.msra.mxu0 0
      %672 = vmatprep.subr.bf16.mxu0 0
      %673 = vmatpush1.bf16.msra.mxu0 0
      %674 = vmatprep.subr.bf16.mxu0 0
      %675 = vmatpush1.bf16.msra.mxu0 0
      %676 = vmatprep.subr.bf16.mxu0 0
      %677 = vmatpush1.bf16.msra.mxu0 0
      %678 = vmatprep.subr.bf16.mxu0 0
      %679 = vmatpush1.bf16.msra.mxu0 0
      %680 = vmatprep.subr.bf16.mxu0 0
      %681 = vmatpush1.bf16.msra.mxu0 0
      %682 = vmatprep.subr.bf16.mxu0 0
      %683 = vmatpush1.bf16.msra.mxu0 0
      %684 = vmatprep.subr.bf16.mxu0 0
      %685 = vmatpush1.bf16.msra.mxu0 0
      %686 = vmatprep.subr.bf16.mxu0 0
      %687 = vmatpush1.bf16.msra.mxu0 0
      %688 = vmatprep.subr.bf16.mxu0 0
      %689 = vmatpush1.bf16.msra.mxu0 0
      %690 = vmatprep.subr.bf16.mxu0 0
      %691 = vmatpush1.bf16.msra.mxu0 0
      %692 = vmatprep.subr.bf16.mxu0 0
      %693 = vmatpush1.bf16.msra.mxu0 0
      %694 = vmatprep.mubr.bf16.mxu0 0
      %695 = vmatmul.mubr.bf16.gmra.mrb[0].mxu0 %v653
      %v696 = vpop.f32.mrb[0].mxu0
      %v697 = vadd.f32 %v649, %v696
      %v698 = vpop.f32.mrb[0].mxu0
      %v699 = vadd.f32 %v649, %v698
      %v700 = vpop.f32.mrb[0].mxu0
      %v701 = vpop.f32.mrb[0].mxu0
      %702 = vdwg.mxu0
      %v703 = vmax.f32 %v697, 0.0
      %v704 = vmax.f32 %v699, 0.0
      %707 = vrot.lane.b32.xlu0 %v703, 17
      %v708 = vpop.permute.xlu0 %707
      %709 = vrot.lane.b32.xlu0 %v704, 17
      %v710 = vpop.permute.xlu0 %709
      %v711 = vsel %vm442, %v708, %v710
      %v715 = vsel %vm442, 0.0, %v708
      %v716 = vsel %vm442, %v710, 0.0
      %v717 = vmul.f32 %v715, %v398
      %v718 = vmul.f32 %v711, %v399
      %v719 = vmul.f32 %v715, %v454
      %v720 = vmul.f32 %v711, %v458
      %v721 = vmul.f32 %v716, %v456
      %v722 = vmul.f32 %v715, %v468
      %v723 = vmul.f32 %v711, %v472
      %v724 = vmul.f32 %v716, %v470
      %v725 = vmul.f32 %v715, %v480
      %v726 = vmul.f32 %v711, %v484
      %v727 = vmul.f32 %v716, %v482
      %v728 = vmul.f32 %v715, %v492
      %v729 = vmul.f32 %v711, %v496
      %v730 = vmul.f32 %v716, %v494
      %v731 = vmul.f32 %v715, %v504
      %v732 = vmul.f32 %v711, %v508
      %v733 = vmul.f32 %v716, %v506
      %v736 = vrot.slane %v715, 4
      %v737 = vrot.slane %v711, 4
      %v738 = vrot.slane %v716, 4
      %739 = vrot.lane.b32.xlu0 %v736, 127
      %v740 = vpop.permute.xlu0 %739
      %741 = vrot.lane.b32.xlu0 %v737, 127
      %v742 = vpop.permute.xlu0 %741
      %743 = vrot.lane.b32.xlu0 %v738, 127
      %v744 = vpop.permute.xlu0 %743
      %v745 = vsel %vm526, %v740, %v742
      %v746 = vsel %vm526, %v742, %v744
      %752 = vrot.lane.b32.xlu0 %v719, 126
      %v753 = vpop.permute.xlu0 %752
      %754 = vrot.lane.b32.xlu0 %v720, 126
      %v755 = vpop.permute.xlu0 %754
      %756 = vrot.lane.b32.xlu0 %v721, 126
      %v757 = vpop.permute.xlu0 %756
      %v758 = vsel %vm540, %v753, %v755
      %v759 = vsel %vm540, %v755, %v757
      %v765 = vrot.slane %v722, 4
      %v766 = vrot.slane %v723, 4
      %v767 = vrot.slane %v724, 4
      %768 = vrot.lane.b32.xlu0 %v765, 112
      %v769 = vpop.permute.xlu0 %768
      %770 = vrot.lane.b32.xlu0 %v766, 112
      %v771 = vpop.permute.xlu0 %770
      %772 = vrot.lane.b32.xlu0 %v767, 112
      %v773 = vpop.permute.xlu0 %772
      %v774 = vsel %vm557, %v769, %v771
      %v775 = vsel %vm557, %v771, %v773
      %778 = vrot.lane.b32.xlu0 %v715, 111
      %v779 = vpop.permute.xlu0 %778
      %780 = vrot.lane.b32.xlu0 %v711, 111
      %v781 = vpop.permute.xlu0 %780
      %782 = vrot.lane.b32.xlu0 %v716, 111
      %v783 = vpop.permute.xlu0 %782
      %v784 = vsel %vm568, %v779, %v781
      %v785 = vsel %vm568, %v781, %v783
      %v791 = vrot.slane %v725, 4
      %v792 = vrot.slane %v726, 4
      %v793 = vrot.slane %v727, 4
      %794 = vrot.lane.b32.xlu0 %v791, 110
      %v795 = vpop.permute.xlu0 %794
      %796 = vrot.lane.b32.xlu0 %v792, 110
      %v797 = vpop.permute.xlu0 %796
      %798 = vrot.lane.b32.xlu0 %v793, 110
      %v799 = vpop.permute.xlu0 %798
      %v800 = vsel %vm585, %v795, %v797
      %v801 = vsel %vm585, %v797, %v799
      %807 = vrot.lane.b32.xlu0 %v728, 96
      %v808 = vpop.permute.xlu0 %807
      %809 = vrot.lane.b32.xlu0 %v729, 96
      %v810 = vpop.permute.xlu0 %809
      %811 = vrot.lane.b32.xlu0 %v730, 96
      %v812 = vpop.permute.xlu0 %811
      %v813 = vsel %vm599, %v808, %v810
      %v814 = vsel %vm599, %v810, %v812
      %817 = vrot.lane.b32.xlu0 %v736, 95
      %v818 = vpop.permute.xlu0 %817
      %819 = vrot.lane.b32.xlu0 %v737, 95
      %v820 = vpop.permute.xlu0 %819
      %821 = vrot.lane.b32.xlu0 %v738, 95
      %v822 = vpop.permute.xlu0 %821
      %v823 = vsel %vm610, %v818, %v820
      %v824 = vsel %vm610, %v820, %v822
      %830 = vrot.lane.b32.xlu0 %v731, 94
      %v831 = vpop.permute.xlu0 %830
      %832 = vrot.lane.b32.xlu0 %v732, 94
      %v833 = vpop.permute.xlu0 %832
      %834 = vrot.lane.b32.xlu0 %v733, 94
      %v835 = vpop.permute.xlu0 %834
      %v836 = vsel %vm624, %v831, %v833
      %v837 = vsel %vm624, %v833, %v835
      %v840 = vsel %vm629, %v717, %v745
      %v841 = vsel %vm629, %v718, %v746
      %v842 = vsel %vm629, %v758, %v774
      %v843 = vsel %vm629, %v759, %v775
      %v844 = vsel %vm629, %v784, %v800
      %v845 = vsel %vm629, %v785, %v801
      %v846 = vsel %vm629, %v813, %v823
      %v847 = vsel %vm629, %v814, %v824
      %v848 = vpack.c.bf16 %v842, %v840
      %v849 = vpack.c.bf16 %v843, %v841
      %v850 = vpack.c.bf16 %v846, %v844
      %v851 = vpack.c.bf16 %v847, %v845
      %v852 = vpack.c.bf16 %v836, %v836
      %v853 = vpack.c.bf16 %v837, %v837
      %v854 = vld [vmem:[%s3] sm:$0x3]
      %v855 = vld [vmem:[%s4] sm:$0xf]
      %857 = vset.pattern.permute.xlu0 0
      %858 = vperm.xlu0 %857, %v855
      %v859 = vpop.permute.xlu0 %858
      %v862 = vsel %vm651, %v854, 0
      %v865 = vsel %vm655, %v852, 0
      %v868 = vsel %vm655, %v853, 0
      %870 = vmatprep.subr.bf16.mxu0 %v849
      %871 = vmatpush1.bf16.msra.mxu0 %v848
      %872 = vmatprep.subr.bf16.mxu0 %v851
      %873 = vmatpush1.bf16.msra.mxu0 %v850
      %874 = vmatprep.subr.bf16.mxu0 %v868
      %875 = vmatpush1.bf16.msra.mxu0 %v865
      %876 = vmatprep.subr.bf16.mxu0 0
      %877 = vmatpush1.bf16.msra.mxu0 0
      %878 = vmatprep.subr.bf16.mxu0 0
      %879 = vmatpush1.bf16.msra.mxu0 0
      %880 = vmatprep.subr.bf16.mxu0 0
      %881 = vmatpush1.bf16.msra.mxu0 0
      %882 = vmatprep.subr.bf16.mxu0 0
      %883 = vmatpush1.bf16.msra.mxu0 0
      %884 = vmatprep.subr.bf16.mxu0 0
      %885 = vmatpush1.bf16.msra.mxu0 0
      %886 = vmatprep.subr.bf16.mxu0 0
      %887 = vmatpush1.bf16.msra.mxu0 0
      %888 = vmatprep.subr.bf16.mxu0 0
      %889 = vmatpush1.bf16.msra.mxu0 0
      %890 = vmatprep.subr.bf16.mxu0 0
      %891 = vmatpush1.bf16.msra.mxu0 0
      %892 = vmatprep.subr.bf16.mxu0 0
      %893 = vmatpush1.bf16.msra.mxu0 0
      %894 = vmatprep.subr.bf16.mxu0 0
      %895 = vmatpush1.bf16.msra.mxu0 0
      %896 = vmatprep.subr.bf16.mxu0 0
      %897 = vmatpush1.bf16.msra.mxu0 0
      %898 = vmatprep.subr.bf16.mxu0 0
      %899 = vmatpush1.bf16.msra.mxu0 0
      %900 = vmatprep.subr.bf16.mxu0 0
      %901 = vmatpush1.bf16.msra.mxu0 0
      %902 = vmatprep.mubr.bf16.mxu0 0
      %903 = vmatmul.mubr.bf16.gmra.mrb[0].mxu0 %v862
      %v904 = vpop.f32.mrb[0].mxu0
      %v905 = vadd.f32 %v859, %v904
      %v906 = vpop.f32.mrb[0].mxu0
      %v907 = vadd.f32 %v859, %v906
      %v908 = vpop.f32.mrb[0].mxu0
      %v909 = vpop.f32.mrb[0].mxu0
      %910 = vdwg.mxu0
      %v912 = vadd.f32 %v905, %v336
      %v913 = vadd.f32 %v907, %v437
      %v914 = vmax.f32 %v912, 0.0
      %v915 = vmax.f32 %v913, 0.0
      %v916 = vsel %vm629, %v914, 0.0
      %v917 = vsel %vm629, %v915, 0.0
      %v918 = vadd.f32 %v916, %v917
      %919 = vadd.xlane.f32.xlu0 %v918
      %v920 = vpop.xlane.xlu0 %919
      %v921 = vrcp.pop 256.0
      %v922 = vmul.f32 %v920, %v921
      %v923 = vsel %vm629, %v914, -inf
      %v924 = vsel %vm629, %v915, -inf
      %v925 = vmax.f32 %v923, %v924
      %926 = vmax.xlane.f32.xlu0 %v925
      %v927 = vpop.xlane.xlu0 %926
      %vm928 = vcmask 7168
      %v929 = vsel %vm928, %v922, %v927
      %v930 = vld [vmem:[%s5] sm:$0x3]
      %vm931 = vcmask 31744
      %v933 = vsel %vm931, %v930, 0
      %v936 = vsel %vm629, %v929, 0
      %938 = vmatprep.subr.mxu0 0.0
      %939 = vmatpush1.msra.mxu0 %v936
      %940 = vmatprep.subr.mxu0 0.0
      %941 = vmatpush1.msra.mxu0 0.0
      %942 = vmatprep.subr.mxu0 0.0
      %943 = vmatpush1.msra.mxu0 0.0
      %944 = vmatprep.subr.mxu0 0.0
      %945 = vmatpush1.msra.mxu0 0.0
      %946 = vmatprep.subr.mxu0 0.0
      %947 = vmatpush1.msra.mxu0 0.0
      %948 = vmatprep.subr.mxu0 0.0
      %949 = vmatpush1.msra.mxu0 0.0
      %950 = vmatprep.subr.mxu0 0.0
      %951 = vmatpush1.msra.mxu0 0.0
      %952 = vmatprep.subr.mxu0 0.0
      %953 = vmatpush1.msra.mxu0 0.0
      %954 = vmatprep.subr.mxu0 0.0
      %955 = vmatpush1.msra.mxu0 0.0
      %956 = vmatprep.subr.mxu0 0.0
      %957 = vmatpush1.msra.mxu0 0.0
      %958 = vmatprep.subr.mxu0 0.0
      %959 = vmatpush1.msra.mxu0 0.0
      %960 = vmatprep.subr.mxu0 0.0
      %961 = vmatpush1.msra.mxu0 0.0
      %962 = vmatprep.subr.mxu0 0.0
      %963 = vmatpush1.msra.mxu0 0.0
      %964 = vmatprep.subr.mxu0 0.0
      %965 = vmatpush1.msra.mxu0 0.0
      %966 = vmatprep.subr.mxu0 0.0
      %967 = vmatpush1.msra.mxu0 0.0
      %968 = vmatprep.subr.mxu0 0.0
      %969 = vmatpush1.msra.mxu0 0.0
      %970 = vmatprep.subr.mxu0 0.0
      %971 = vmatpush1.msra.mxu0 0.0
      %972 = vmatprep.subr.mxu0 0.0
      %973 = vmatpush1.msra.mxu0 0.0
      %974 = vmatprep.subr.mxu0 0.0
      %975 = vmatpush1.msra.mxu0 0.0
      %976 = vmatprep.subr.mxu0 0.0
      %977 = vmatpush1.msra.mxu0 0.0
      %978 = vmatprep.subr.mxu0 0.0
      %979 = vmatpush1.msra.mxu0 0.0
      %980 = vmatprep.subr.mxu0 0.0
      %981 = vmatpush1.msra.mxu0 0.0
      %982 = vmatprep.subr.mxu0 0.0
      %983 = vmatpush1.msra.mxu0 0.0
      %984 = vmatprep.subr.mxu0 0.0
      %985 = vmatpush1.msra.mxu0 0.0
      %986 = vmatprep.subr.mxu0 0.0
      %987 = vmatpush1.msra.mxu0 0.0
      %988 = vmatprep.subr.mxu0 0.0
      %989 = vmatpush1.msra.mxu0 0.0
      %990 = vmatprep.subr.mxu0 0.0
      %991 = vmatpush1.msra.mxu0 0.0
      %992 = vmatprep.subr.mxu0 0.0
      %993 = vmatpush1.msra.mxu0 0.0
      %994 = vmatprep.subr.mxu0 0.0
      %995 = vmatpush1.msra.mxu0 0.0
      %996 = vmatprep.subr.mxu0 0.0
      %997 = vmatpush1.msra.mxu0 0.0
      %998 = vmatprep.subr.mxu0 0.0
      %999 = vmatpush1.msra.mxu0 0.0
      %1000 = vmatprep.subr.mxu0 0.0
      %1001 = vmatpush1.msra.mxu0 0.0
      %1002 = vmatprep.mubr.f32.mxu0 0.0
      %1003 = vmatmul.mubr.f32.gmra.mrb[0].mxu0 %v933
      %v1004 = vpop.f32.mrb[0].mxu0
      %v1005 = vadd.f32 0.0, %v1004
      %v1006 = vpop.f32.mrb[0].mxu0
      %1007 = vdwg.mxu0
      %v1008 = vmax.f32 %v1005, 0.0
      %v1009 = vld [vmem:[%s6] sm:$0xf]
      %v1011 = vsel %vm457, %v1009, 0
      %v1014 = vsel %vm655, %v1008, 0
      %1016 = vmatprep.subr.mxu0 0.0
      %1017 = vmatpush1.msra.mxu0 %v1014
      %1018 = vmatprep.subr.mxu0 0.0
      %1019 = vmatpush1.msra.mxu0 0.0
      %1020 = vmatprep.subr.mxu0 0.0
      %1021 = vmatpush1.msra.mxu0 0.0
      %1022 = vmatprep.subr.mxu0 0.0
      %1023 = vmatpush1.msra.mxu0 0.0
      %1024 = vmatprep.subr.mxu0 0.0
      %1025 = vmatpush1.msra.mxu0 0.0
      %1026 = vmatprep.subr.mxu0 0.0
      %1027 = vmatpush1.msra.mxu0 0.0
      %1028 = vmatprep.subr.mxu0 0.0
      %1029 = vmatpush1.msra.mxu0 0.0
      %1030 = vmatprep.subr.mxu0 0.0
      %1031 = vmatpush1.msra.mxu0 0.0
      %1032 = vmatprep.subr.mxu0 0.0
      %1033 = vmatpush1.msra.mxu0 0.0
      %1034 = vmatprep.subr.mxu0 0.0
      %1035 = vmatpush1.msra.mxu0 0.0
      %1036 = vmatprep.subr.mxu0 0.0
      %1037 = vmatpush1.msra.mxu0 0.0
      %1038 = vmatprep.subr.mxu0 0.0
      %1039 = vmatpush1.msra.mxu0 0.0
      %1040 = vmatprep.subr.mxu0 0.0
      %1041 = vmatpush1.msra.mxu0 0.0
      %1042 = vmatprep.subr.mxu0 0.0
      %1043 = vmatpush1.msra.mxu0 0.0
      %1044 = vmatprep.subr.mxu0 0.0
      %1045 = vmatpush1.msra.mxu0 0.0
      %1046 = vmatprep.subr.mxu0 0.0
      %1047 = vmatpush1.msra.mxu0 0.0
      %1048 = vmatprep.subr.mxu0 0.0
      %1049 = vmatpush1.msra.mxu0 0.0
      %1050 = vmatprep.subr.mxu0 0.0
      %1051 = vmatpush1.msra.mxu0 0.0
      %1052 = vmatprep.subr.mxu0 0.0
      %1053 = vmatpush1.msra.mxu0 0.0
      %1054 = vmatprep.subr.mxu0 0.0
      %1055 = vmatpush1.msra.mxu0 0.0
      %1056 = vmatprep.subr.mxu0 0.0
      %1057 = vmatpush1.msra.mxu0 0.0
      %1058 = vmatprep.subr.mxu0 0.0
      %1059 = vmatpush1.msra.mxu0 0.0
      %1060 = vmatprep.subr.mxu0 0.0
      %1061 = vmatpush1.msra.mxu0 0.0
      %1062 = vmatprep.subr.mxu0 0.0
      %1063 = vmatpush1.msra.mxu0 0.0
      %1064 = vmatprep.subr.mxu0 0.0
      %1065 = vmatpush1.msra.mxu0 0.0
      %1066 = vmatprep.subr.mxu0 0.0
      %1067 = vmatpush1.msra.mxu0 0.0
      %1068 = vmatprep.subr.mxu0 0.0
      %1069 = vmatpush1.msra.mxu0 0.0
      %1070 = vmatprep.subr.mxu0 0.0
      %1071 = vmatpush1.msra.mxu0 0.0
      %1072 = vmatprep.subr.mxu0 0.0
      %1073 = vmatpush1.msra.mxu0 0.0
      %1074 = vmatprep.subr.mxu0 0.0
      %1075 = vmatpush1.msra.mxu0 0.0
      %1076 = vmatprep.subr.mxu0 0.0
      %1077 = vmatpush1.msra.mxu0 0.0
      %1078 = vmatprep.subr.mxu0 0.0
      %1079 = vmatpush1.msra.mxu0 0.0
      %1080 = vmatprep.mubr.f32.mxu0 0.0
      %1081 = vmatmul.mubr.f32.gmra.mrb[0].mxu0 %v1011
      %v1082 = vpop.f32.mrb[0].mxu0
      %v1083 = vadd.f32 0.0, %v1082
      %v1084 = vpop.f32.mrb[0].mxu0
      %1085 = vdwg.mxu0
      %1087 = vrot.lane.b32.xlu0 %v1083, 127
      %v1088 = vpop.permute.xlu0 %1087
      %v1090 = vadd.f32 %v1083, %v1088
      %v1091 = vxor.u32 %v1090, 2147483648
      %v1092 = vmul.f32 %v1091, 1.442695
      %v1093 = vpow.pop %v1092
      %v1094 = vadd.f32 %v1093, 1.0
      %v1095 = vrcp.pop %v1094
      %v1096 = vmul.f32 1.0, %v1095
      %1098 = vset.pattern.permute.xlu0 0
      %1099 = vperm.xlu0 %1098, %v1096
      %v1100 = vpop.permute.xlu0 %1099
      %v1102 = vmul.f32 %v914, %v1100
      %v1103 = vmul.f32 %v915, %v1100
      %v1104 = vsel %vm629, %v1102, 0.0
      %v1105 = vrot.slane %v1104, 4
      %v1106 = vadd.f32 %v1104, %v1105
      %v1107 = vrot.slane %v1106, 2
      %v1108 = vadd.f32 %v1106, %v1107
      %v1109 = vrot.slane %v1108, 1
      %v1110 = vadd.f32 %v1108, %v1109
      %v1111 = vsel %vm629, %v1103, 0.0
      %v1112 = vrot.slane %v1111, 4
      %v1113 = vadd.f32 %v1111, %v1112
      %v1114 = vrot.slane %v1113, 2
      %v1115 = vadd.f32 %v1113, %v1114
      %v1116 = vrot.slane %v1115, 1
      %v1117 = vadd.f32 %v1115, %v1116
      %v1118 = vrcp.pop 4.0
      %v1119 = vmul.f32 %v1110, %v1118
      %v1120 = vmul.f32 %v1117, %v1118
      %v1121 = vsel %vm629, %v1102, -inf
      %v1122 = vrot.slane %v1121, 4
      %v1123 = vmax.f32 %v1121, %v1122
      %v1124 = vrot.slane %v1123, 2
      %v1125 = vmax.f32 %v1123, %v1124
      %v1126 = vrot.slane %v1125, 1
      %v1127 = vmax.f32 %v1125, %v1126
      %v1128 = vsel %vm629, %v1103, -inf
      %v1129 = vrot.slane %v1128, 4
      %v1130 = vmax.f32 %v1128, %v1129
      %v1131 = vrot.slane %v1130, 2
      %v1132 = vmax.f32 %v1130, %v1131
      %v1133 = vrot.slane %v1132, 1
      %v1134 = vmax.f32 %v1132, %v1133
      %vm1135 = vcmask 1040384
      %v1136 = vsel %vm1135, %v1119, %v1127
      %v1137 = vsel %vm1135, %v1120, %v1134
      %1140 = vrot.lane.b32.xlu0 %v1136, 3
      %v1141 = vpop.permute.xlu0 %1140
      %1142 = vrot.lane.b32.xlu0 %v1137, 3
      %v1143 = vpop.permute.xlu0 %1142
      %vm1144 = vcmask 23552
      %v1145 = vsel %vm1144, %v1141, %v1143
      %v1149 = vsel %vm1144, 0.0, %v1141
      %v1150 = vsel %vm1144, %v1143, 0.0
      %v1151 = vmul.f32 %v1149, %v374
      %v1152 = vmul.f32 %v1145, %v375
      %1155 = vrot.lane.b32.xlu0 %v386, 1
      %v1156 = vpop.permute.xlu0 %1155
      %1157 = vrot.lane.b32.xlu0 %v387, 1
      %v1158 = vpop.permute.xlu0 %1157
      %v1159 = vsel %vm928, %v1156, %v1158
      %v1163 = vmul.f32 %v1149, %v1156
      %v1164 = vmul.f32 %v1145, %v1159
      %v1165 = vmul.f32 %v1150, %v1158
      %1166 = vrot.lane.b32.xlu0 %v398, 2
      %v1167 = vpop.permute.xlu0 %1166
      %1168 = vrot.lane.b32.xlu0 %v399, 2
      %v1169 = vpop.permute.xlu0 %1168
      %v1170 = vsel %vm457, %v1167, %v1169
      %v1174 = vmul.f32 %v1149, %v1167
      %v1175 = vmul.f32 %v1145, %v1170
      %v1176 = vmul.f32 %v1150, %v1169
      %1177 = vrot.lane.b32.xlu0 %v410, 4
      %v1178 = vpop.permute.xlu0 %1177
      %1179 = vrot.lane.b32.xlu0 %v411, 4
      %v1180 = vpop.permute.xlu0 %1179
      %v1181 = vsel %vm931, %v1178, %v1180
      %v1185 = vmul.f32 %v1149, %v1178
      %v1186 = vmul.f32 %v1145, %v1181
      %v1187 = vmul.f32 %v1150, %v1180
      %1190 = vrot.lane.b32.xlu0 %v422, 5
      %v1191 = vpop.permute.xlu0 %1190
      %1192 = vrot.lane.b32.xlu0 %v423, 5
      %v1193 = vpop.permute.xlu0 %1192
      %vm1194 = vcmask 39936
      %v1195 = vsel %vm1194, %v1191, %v1193
      %v1199 = vmul.f32 %v1149, %v1191
      %v1200 = vmul.f32 %v1145, %v1195
      %v1201 = vmul.f32 %v1150, %v1193
      %1204 = vrot.lane.b32.xlu0 %v434, 6
      %v1205 = vpop.permute.xlu0 %1204
      %1206 = vrot.lane.b32.xlu0 %v435, 6
      %v1207 = vpop.permute.xlu0 %1206
      %vm1208 = vcmask 48128
      %v1209 = vsel %vm1208, %v1205, %v1207
      %v1213 = vmul.f32 %v1149, %v1205
      %v1214 = vmul.f32 %v1145, %v1209
      %v1215 = vmul.f32 %v1150, %v1207
      %v1219 = vrot.slane %v1163, 6
      %v1220 = vrot.slane %v1164, 6
      %v1221 = vrot.slane %v1165, 6
      %1222 = vrot.lane.b32.xlu0 %v1219, 127
      %v1223 = vpop.permute.xlu0 %1222
      %1224 = vrot.lane.b32.xlu0 %v1220, 127
      %v1225 = vpop.permute.xlu0 %1224
      %1226 = vrot.lane.b32.xlu0 %v1221, 127
      %v1227 = vpop.permute.xlu0 %1226
      %v1228 = vsel %vm526, %v1223, %v1225
      %v1229 = vsel %vm526, %v1225, %v1227
      %v1235 = vrot.slane %v1174, 4
      %v1236 = vrot.slane %v1175, 4
      %v1237 = vrot.slane %v1176, 4
      %1238 = vrot.lane.b32.xlu0 %v1235, 126
      %v1239 = vpop.permute.xlu0 %1238
      %1240 = vrot.lane.b32.xlu0 %v1236, 126
      %v1241 = vpop.permute.xlu0 %1240
      %1242 = vrot.lane.b32.xlu0 %v1237, 126
      %v1243 = vpop.permute.xlu0 %1242
      %v1244 = vsel %vm540, %v1239, %v1241
      %v1245 = vsel %vm540, %v1241, %v1243
      %v1250 = vrot.slane %v1149, 2
      %v1251 = vrot.slane %v1145, 2
      %v1252 = vrot.slane %v1150, 2
      %1253 = vrot.lane.b32.xlu0 %v1250, 125
      %v1254 = vpop.permute.xlu0 %1253
      %1255 = vrot.lane.b32.xlu0 %v1251, 125
      %v1256 = vpop.permute.xlu0 %1255
      %1257 = vrot.lane.b32.xlu0 %v1252, 125
      %v1258 = vpop.permute.xlu0 %1257
      %vm1259 = vcmask 1022976
      %v1260 = vsel %vm1259, %v1254, %v1256
      %v1261 = vsel %vm1259, %v1256, %v1258
      %1267 = vrot.lane.b32.xlu0 %v1185, 124
      %v1268 = vpop.permute.xlu0 %1267
      %1269 = vrot.lane.b32.xlu0 %v1186, 124
      %v1270 = vpop.permute.xlu0 %1269
      %1271 = vrot.lane.b32.xlu0 %v1187, 124
      %v1272 = vpop.permute.xlu0 %1271
      %vm1273 = vcmask 1014784
      %v1274 = vsel %vm1273, %v1268, %v1270
      %v1275 = vsel %vm1273, %v1270, %v1272
      %v1281 = vrot.slane %v1199, 6
      %v1282 = vrot.slane %v1200, 6
      %v1283 = vrot.slane %v1201, 6
      %1284 = vrot.lane.b32.xlu0 %v1281, 123
      %v1285 = vpop.permute.xlu0 %1284
      %1286 = vrot.lane.b32.xlu0 %v1282, 123
      %v1287 = vpop.permute.xlu0 %1286
      %1288 = vrot.lane.b32.xlu0 %v1283, 123
      %v1289 = vpop.permute.xlu0 %1288
      %vm1290 = vcmask 1006592
      %v1291 = vsel %vm1290, %v1285, %v1287
      %v1292 = vsel %vm1290, %v1287, %v1289
      %v1298 = vrot.slane %v1213, 4
      %v1299 = vrot.slane %v1214, 4
      %v1300 = vrot.slane %v1215, 4
      %1301 = vrot.lane.b32.xlu0 %v1298, 122
      %v1302 = vpop.permute.xlu0 %1301
      %1303 = vrot.lane.b32.xlu0 %v1299, 122
      %v1304 = vpop.permute.xlu0 %1303
      %1305 = vrot.lane.b32.xlu0 %v1300, 122
      %v1306 = vpop.permute.xlu0 %1305
      %vm1307 = vcmask 998400
      %v1308 = vsel %vm1307, %v1302, %v1304
      %v1309 = vsel %vm1307, %v1304, %v1306
      %v1312 = vsel %vm655, %v1151, %v1228
      %v1313 = vsel %vm655, %v1152, %v1229
      %v1314 = vsel %vm629, %v1312, %v1244
      %v1315 = vsel %vm629, %v1313, %v1245
      %vm1316 = vcmask 1045504
      %v1317 = vsel %vm1316, %v1314, %v1260
      %v1318 = vsel %vm1316, %v1315, %v1261
      %v1319 = vsel %vm655, %v1274, %v1291
      %v1320 = vsel %vm655, %v1275, %v1292
      %v1321 = vsel %vm629, %v1319, %v1308
      %v1322 = vsel %vm629, %v1320, %v1309
      %v1323 = vld [vmem:[%s7] sm:$0x7f]
      %vm1324 = vcmask 113664
      %v1326 = vsel %vm1324, %v1323, 0
      %v1329 = vsel %vm1316, %v1321, 0
      %v1332 = vsel %vm1316, %v1322, 0
      %1334 = vmatprep.subr.mxu0 %v1318
      %1335 = vmatpush1.msra.mxu0 %v1317
      %1336 = vmatprep.subr.mxu0 %v1332
      %1337 = vmatpush1.msra.mxu0 %v1329
      %1338 = vmatprep.subr.mxu0 0.0
      %1339 = vmatpush1.msra.mxu0 0.0
      %1340 = vmatprep.subr.mxu0 0.0
      %1341 = vmatpush1.msra.mxu0 0.0
      %1342 = vmatprep.subr.mxu0 0.0
      %1343 = vmatpush1.msra.mxu0 0.0
      %1344 = vmatprep.subr.mxu0 0.0
      %1345 = vmatpush1.msra.mxu0 0.0
      %1346 = vmatprep.subr.mxu0 0.0
      %1347 = vmatpush1.msra.mxu0 0.0
      %1348 = vmatprep.subr.mxu0 0.0
      %1349 = vmatpush1.msra.mxu0 0.0
      %1350 = vmatprep.subr.mxu0 0.0
      %1351 = vmatpush1.msra.mxu0 0.0
      %1352 = vmatprep.subr.mxu0 0.0
      %1353 = vmatpush1.msra.mxu0 0.0
      %1354 = vmatprep.subr.mxu0 0.0
      %1355 = vmatpush1.msra.mxu0 0.0
      %1356 = vmatprep.subr.mxu0 0.0
      %1357 = vmatpush1.msra.mxu0 0.0
      %1358 = vmatprep.subr.mxu0 0.0
      %1359 = vmatpush1.msra.mxu0 0.0
      %1360 = vmatprep.subr.mxu0 0.0
      %1361 = vmatpush1.msra.mxu0 0.0
      %1362 = vmatprep.subr.mxu0 0.0
      %1363 = vmatpush1.msra.mxu0 0.0
      %1364 = vmatprep.subr.mxu0 0.0
      %1365 = vmatpush1.msra.mxu0 0.0
      %1366 = vmatprep.subr.mxu0 0.0
      %1367 = vmatpush1.msra.mxu0 0.0
      %1368 = vmatprep.subr.mxu0 0.0
      %1369 = vmatpush1.msra.mxu0 0.0
      %1370 = vmatprep.subr.mxu0 0.0
      %1371 = vmatpush1.msra.mxu0 0.0
      %1372 = vmatprep.subr.mxu0 0.0
      %1373 = vmatpush1.msra.mxu0 0.0
      %1374 = vmatprep.subr.mxu0 0.0
      %1375 = vmatpush1.msra.mxu0 0.0
      %1376 = vmatprep.subr.mxu0 0.0
      %1377 = vmatpush1.msra.mxu0 0.0
      %1378 = vmatprep.subr.mxu0 0.0
      %1379 = vmatpush1.msra.mxu0 0.0
      %1380 = vmatprep.subr.mxu0 0.0
      %1381 = vmatpush1.msra.mxu0 0.0
      %1382 = vmatprep.subr.mxu0 0.0
      %1383 = vmatpush1.msra.mxu0 0.0
      %1384 = vmatprep.subr.mxu0 0.0
      %1385 = vmatpush1.msra.mxu0 0.0
      %1386 = vmatprep.subr.mxu0 0.0
      %1387 = vmatpush1.msra.mxu0 0.0
      %1388 = vmatprep.subr.mxu0 0.0
      %1389 = vmatpush1.msra.mxu0 0.0
      %1390 = vmatprep.subr.mxu0 0.0
      %1391 = vmatpush1.msra.mxu0 0.0
      %1392 = vmatprep.subr.mxu0 0.0
      %1393 = vmatpush1.msra.mxu0 0.0
      %1394 = vmatprep.subr.mxu0 0.0
      %1395 = vmatpush1.msra.mxu0 0.0
      %1396 = vmatprep.subr.mxu0 0.0
      %1397 = vmatpush1.msra.mxu0 0.0
      %1398 = vmatprep.mubr.f32.mxu0 0.0
      %1399 = vmatmul.mubr.f32.gmra.mrb[0].mxu0 %v1326
      %v1400 = vpop.f32.mrb[0].mxu0
      %v1401 = vadd.f32 0.0, %v1400
      %v1402 = vpop.f32.mrb[0].mxu0
      %v1403 = vadd.f32 0.0, %v1402
      %1404 = vdwg.mxu0
      %1407 = vrot.lane.b32.xlu0 %v1401, 48
      %v1408 = vpop.permute.xlu0 %1407
      %1409 = vrot.lane.b32.xlu0 %v1403, 48
      %v1410 = vpop.permute.xlu0 %1409
      %vm1411 = vcmask 392192
      %v1412 = vsel %vm1411, %v1408, %v1410
      %v1416 = vsel %vm1411, 0.0, %v1408
      %v1417 = vsel %vm1411, %v1410, 0.0
      %v1418 = vadd.f32 %v1416, 0.0
      %v1419 = vadd.f32 %v1412, 0.0
      %v1422 = vrot.slane %v1416, 1
      %v1423 = vrot.slane %v1412, 1
      %v1424 = vrot.slane %v1417, 1
      %1425 = vrot.lane.b32.xlu0 %v1422, 112
      %v1426 = vpop.permute.xlu0 %1425
      %1427 = vrot.lane.b32.xlu0 %v1423, 112
      %v1428 = vpop.permute.xlu0 %1427
      %1429 = vrot.lane.b32.xlu0 %v1424, 112
      %v1430 = vpop.permute.xlu0 %1429
      %v1431 = vsel %vm557, %v1426, %v1428
      %v1432 = vsel %vm557, %v1428, %v1430
      %v1435 = vadd.f32 %v1418, %v1431
      %v1436 = vadd.f32 %v1419, %v1432
      %v1437 = vrot.slane %v1416, 2
      %v1438 = vrot.slane %v1412, 2
      %v1439 = vrot.slane %v1417, 2
      %1440 = vrot.lane.b32.xlu0 %v1437, 96
      %v1441 = vpop.permute.xlu0 %1440
      %1442 = vrot.lane.b32.xlu0 %v1438, 96
      %v1443 = vpop.permute.xlu0 %1442
      %1444 = vrot.lane.b32.xlu0 %v1439, 96
      %v1445 = vpop.permute.xlu0 %1444
      %v1446 = vsel %vm599, %v1441, %v1443
      %v1447 = vsel %vm599, %v1443, %v1445
      %v1450 = vadd.f32 %v1435, %v1446
      %v1451 = vadd.f32 %v1436, %v1447
      %v1452 = vrot.slane %v1416, 3
      %v1453 = vrot.slane %v1412, 3
      %v1454 = vrot.slane %v1417, 3
      %1455 = vrot.lane.b32.xlu0 %v1452, 80
      %v1456 = vpop.permute.xlu0 %1455
      %1457 = vrot.lane.b32.xlu0 %v1453, 80
      %v1458 = vpop.permute.xlu0 %1457
      %1459 = vrot.lane.b32.xlu0 %v1454, 80
      %v1460 = vpop.permute.xlu0 %1459
      %vm1461 = vcmask 654336
      %v1462 = vsel %vm1461, %v1456, %v1458
      %v1463 = vsel %vm1461, %v1458, %v1460
      %v1466 = vadd.f32 %v1450, %v1462
      %v1467 = vadd.f32 %v1451, %v1463
      %v1468 = vrot.slane %v1416, 4
      %v1469 = vrot.slane %v1412, 4
      %v1470 = vrot.slane %v1417, 4
      %1471 = vrot.lane.b32.xlu0 %v1468, 64
      %v1472 = vpop.permute.xlu0 %1471
      %1473 = vrot.lane.b32.xlu0 %v1469, 64
      %v1474 = vpop.permute.xlu0 %1473
      %1475 = vrot.lane.b32.xlu0 %v1470, 64
      %v1476 = vpop.permute.xlu0 %1475
      %vm1477 = vcmask 523264
      %v1478 = vsel %vm1477, %v1472, %v1474
      %v1479 = vsel %vm1477, %v1474, %v1476
      %v1482 = vadd.f32 %v1466, %v1478
      %v1483 = vadd.f32 %v1467, %v1479
      %v1484 = vrot.slane %v1416, 5
      %v1485 = vrot.slane %v1412, 5
      %v1486 = vrot.slane %v1417, 5
      %1487 = vrot.lane.b32.xlu0 %v1484, 48
      %v1488 = vpop.permute.xlu0 %1487
      %1489 = vrot.lane.b32.xlu0 %v1485, 48
      %v1490 = vpop.permute.xlu0 %1489
      %1491 = vrot.lane.b32.xlu0 %v1486, 48
      %v1492 = vpop.permute.xlu0 %1491
      %v1493 = vsel %vm1411, %v1488, %v1490
      %v1494 = vsel %vm1411, %v1490, %v1492
      %v1497 = vadd.f32 %v1482, %v1493
      %v1498 = vadd.f32 %v1483, %v1494
      %v1499 = vrot.slane %v1416, 6
      %v1500 = vrot.slane %v1412, 6
      %v1501 = vrot.slane %v1417, 6
      %1502 = vrot.lane.b32.xlu0 %v1499, 32
      %v1503 = vpop.permute.xlu0 %1502
      %1504 = vrot.lane.b32.xlu0 %v1500, 32
      %v1505 = vpop.permute.xlu0 %1504
      %1506 = vrot.lane.b32.xlu0 %v1501, 32
      %v1507 = vpop.permute.xlu0 %1506
      %v1508 = vsel %vm495, %v1503, %v1505
      %v1509 = vsel %vm495, %v1505, %v1507
      %v1512 = vadd.f32 %v1497, %v1508
      %v1513 = vadd.f32 %v1498, %v1509
      %v1514 = vld [vmem:[#allocation2] sm:$0x1]
      %1516 = vset.pattern.permute.xlu0 0
      %1517 = vperm.xlu0 %1516, %v1514
      %v1518 = vpop.permute.xlu0 %1517
      %v1520 = vlaneseq
      %v1521 = vshrl.u32 %v1520, 7
      %v1522 = vsub.s32 0, %v1521
      %v1523 = vrot.slane %v1518, %v1522
      %v1524 = vadd.f32 %v1512, %v1523
      %v1525 = vadd.f32 %v1513, %v1523
      %v1526 = vxor.u32 %v1524, 2147483648
      %v1527 = vxor.u32 %v1525, 2147483648
      %v1528 = vmul.f32 %v1526, 1.442695
      %v1529 = vpow.pop %v1528
      %v1530 = vmul.f32 %v1527, 1.442695
      %v1531 = vpow.pop %v1530
      %v1532 = vadd.f32 %v1529, 1.0
      %v1533 = vadd.f32 %v1531, 1.0
      %v1534 = vrcp.pop %v1532
      %v1535 = vmul.f32 1.0, %v1534
      %v1536 = vrcp.pop %v1533
      %v1537 = vmul.f32 1.0, %v1536
      %v1538 = vlaneseq
      %v1539 = vshrl.u32 %v1538, 7
      %v1540 = vsub.s32 0, %v1539
      %v1541 = vrot.slane %v1535, %v1540
      %v1542 = vlaneseq
      %v1543 = vshrl.u32 %v1542, 7
      %v1544 = vsub.s32 0, %v1543
      %v1545 = vrot.slane %v1537, %v1544
      %v1546 = vmul.f32 %v1102, %v1541
      %v1547 = vmul.f32 %v1103, %v1545
      %v1550 = vcombine.low %v1546, %v1547
      %1552 = vst [vmem:[%s334] sm:$0xff] %v1550
      %p1553 = scmp.lt.s32.totalorder %s22, 1
      %s1554 = scalar_select %p1553, %s22, 1
      %s1555 = smul.addr %s1554, 2
      %s1556 = smul.addr %s1555, 4
      %s1557 = scalar_lea.vmem %s9, %s1556
      // Predicated region
      $region57: #{basic_block_cbam_forward.1} parent=55 // pred_check
        %p1558 = pneg %p234
      $region58: #{basic_block_cbam_forward.1} parent=55 // pred_check_branch
        %1560 = sbr.rel (%p1558) target = $region60
      $region59: #{basic_block_cbam_forward.1} parent=55 // pred_region
        _
      $region60: #{basic_block_cbam_forward.1} parent=55 // pred_fallthru
        _
    $region56: #{basic_block_cbam_forward.1} parent=5 // pred_fallthru
      _
    %p1561 = scmp.le.s32.totalorder 2, %s17
    // Predicated region
    $region61: #{basic_block_cbam_forward.1} parent=5 // pred_check
      %p1562 = pneg %p1561
    $region62: #{basic_block_cbam_forward.1} parent=5 // pred_check_branch
      %1564 = sbr.rel (%p1562) target = $region64
    $region63: #{basic_block_cbam_forward.1} parent=5 // pred_region
      %s1565 = ssub.s32 %s17, 2
      // Predicated region
      $region65: #{basic_block_cbam_forward.1} parent=63 // pred_check
        %p1566 = pneg %p240
      $region66: #{basic_block_cbam_forward.1} parent=63 // pred_check_branch
        %1568 = sbr.rel (%p1566) target = $region68
      $region67: #{basic_block_cbam_forward.1} parent=63 // pred_region
        %p1569 = scmp.lt.s32.totalorder %s23, 1
        %s1570 = scalar_select %p1569, %s23, 1
        %s1571 = smul.addr %s1570, 2
        %s1572 = smul.addr %s1571, 4
        %s1573 = scalar_lea.vmem %s9, %s1572
      $region68: #{basic_block_cbam_forward.1} parent=63 // pred_fallthru
        _
    $region64: #{basic_block_cbam_forward.1} parent=5 // pred_fallthru
      _
  $region6: #{basic_block_cbam_forward.1} parent=0 // loop_footer
    %s21 = sadd.s32 1, %s17
  $region7: #{basic_block_cbam_forward.1} parent=0 // loop_footer_branch
    %16 = sbr.rel target = $region3
  $region8: #{basic_block_cbam_forward.1} parent=0 // loop_exit
    _

</llo_original>
